<compile_context>
chip_gen: v6e
topology: v6e:2x2x1
jax: 0.10.0
libtpu: 0.0.40
codegen_flags: <defaults>
</compile_context>

<pallas_src>
import functools
import math

import jax
import jax.numpy as jnp
from jax.experimental import pallas as pl
from jax.experimental.pallas import tpu as pltpu


_VMEM_LIMIT_BYTES = 48 * 1024 * 1024   # > default scoped limit; < v7x 64 MiB physical
_ROW_TILE = 256                        # default row tile (multiple of 8 and of 256)
_FF_TILE = 512                         # default d_ff reduction tile (multiple of 128)


def _round_up(x, m):
    return ((x + m - 1) // m) * m


def _row_tile_and_pad(x2d, tm):
    """Pick a row tile and zero-pad rows so the tile divides exactly (no dropped rows)."""
    m = x2d.shape[0]
    tm = min(tm, _round_up(m, 8))
    mp = _round_up(m, tm)
    if mp != m:
        x2d = jnp.pad(x2d, ((0, mp - m), (0, 0)))
    return x2d, tm, mp


def _pick_ff_tile(d_ff):
    if d_ff <= _FF_TILE:
        return d_ff
    for tf in (_FF_TILE, 256, 128):
        if d_ff % tf == 0:
            return tf
    return d_ff   # odd sizes: fall back to full residency


def _compiler_params(dims):
    return pltpu.CompilerParams(dimension_semantics=dims,
                                vmem_limit_bytes=_VMEM_LIMIT_BYTES)


# ---------------------------------------------------------------------------
# LayerNorm (a2 semantics: unbiased std, eps added to the std, not the variance)
# ---------------------------------------------------------------------------
def _layer_norm_kernel(x_ref, a_ref, b_ref, o_ref, *, eps):
    x = x_ref[...]                                              # (tm, d) f32
    d = x.shape[-1]
    mu = jnp.mean(x, axis=-1, keepdims=True)
    diff = x - mu
    var = jnp.sum(diff * diff, axis=-1, keepdims=True) / (d - 1.0)   # torch .std() is unbiased
    sigma = jnp.sqrt(var)
    o_ref[...] = (a_ref[...] * diff / (sigma + eps) + b_ref[...]).astype(o_ref.dtype)


def layer_norm(x2d, a, b, *, eps=1e-6, tm=_ROW_TILE):
    m, d = x2d.shape
    xp, tm, mp = _row_tile_and_pad(x2d, tm)
    a2 = a.reshape(1, d).astype(jnp.float32)
    b2 = b.reshape(1, d).astype(jnp.float32)
    out = pl.pallas_call(
        functools.partial(_layer_norm_kernel, eps=eps),
        out_shape=jax.ShapeDtypeStruct((mp, d), x2d.dtype),
        grid_spec=pltpu.PrefetchScalarGridSpec(
            num_scalar_prefetch=0,
            grid=(pl.cdiv(mp, tm),),
            in_specs=[
                pl.BlockSpec((tm, d), lambda i: (i, 0)),
                pl.BlockSpec((1, d), lambda i: (0, 0)),
                pl.BlockSpec((1, d), lambda i: (0, 0)),
            ],
            out_specs=pl.BlockSpec((tm, d), lambda i: (i, 0)),
        ),
        compiler_params=_compiler_params(("parallel",)),
    )(xp, a2, b2)
    return out[:m]


# ---------------------------------------------------------------------------
# Linear: y = x @ W^T + b.  W is pre-transposed to (in, out) and cast to bf16 in
# the wrapper (no in-kernel transpose); matmul bf16 x bf16 -> f32; bias add in f32.
# ---------------------------------------------------------------------------
def _linear_kernel(x_ref, wt_ref, b_ref, o_ref):
    x = x_ref[...].astype(jnp.bfloat16)
    y = jnp.dot(x, wt_ref[...], preferred_element_type=jnp.float32)
    o_ref[...] = (y + b_ref[...]).astype(o_ref.dtype)


def linear(x2d, w, b, *, tm=_ROW_TILE):
    m, d_in = x2d.shape
    d_out = w.shape[0]
    xp, tm, mp = _row_tile_and_pad(x2d, tm)
    wt = w.T.astype(jnp.bfloat16)                     # (d_in, d_out)
    br = b.reshape(1, d_out).astype(jnp.float32)
    cost = pl.CostEstimate(
        flops=int(2 * mp * d_in * d_out),
        transcendentals=0,
        bytes_accessed=int(mp * (d_in + d_out) * 4 + d_in * d_out * 2 + d_out * 4),
    )
    out = pl.pallas_call(
        _linear_kernel,
        out_shape=jax.ShapeDtypeStruct((mp, d_out), x2d.dtype),
        grid_spec=pltpu.PrefetchScalarGridSpec(
            num_scalar_prefetch=0,
            grid=(pl.cdiv(mp, tm),),
            in_specs=[
                pl.BlockSpec((tm, d_in), lambda i: (i, 0)),
                pl.BlockSpec((d_in, d_out), lambda i: (0, 0)),
                pl.BlockSpec((1, d_out), lambda i: (0, 0)),
            ],
            out_specs=pl.BlockSpec((tm, d_out), lambda i: (i, 0)),
        ),
        compiler_params=_compiler_params(("parallel",)),
        cost_estimate=cost,
    )(xp, wt, br)
    return out[:m]


# ---------------------------------------------------------------------------
# Position-wise FFN: w2 @ relu(w1 @ x + b1) + b2, tiled over rows ("parallel")
# and over d_ff ("arbitrary" reduction, last axis) with an f32 VMEM accumulator.
# ---------------------------------------------------------------------------
def _ffn_kernel(x_ref, w1t_ref, b1_ref, w2t_ref, b2_ref, o_ref, acc_ref):
    j = pl.program_id(1)

    @pl.when(j == 0)
    def _init():
        acc_ref[...] = jnp.zeros_like(acc_ref)

    x = x_ref[...].astype(jnp.bfloat16)                                # (tm, d_model)
    h = jnp.dot(x, w1t_ref[...], preferred_element_type=jnp.float32)   # (tm, tf) f32
    h = jnp.maximum(h + b1_ref[...], 0.0)                              # bias1 + ReLU in f32
    # TODO(synk): training-mode dropout on h (pltpu.prng_random_bits mask) not emitted;
    # eval-mode dropout == identity.
    acc_ref[...] += jnp.dot(h.astype(jnp.bfloat16), w2t_ref[...],
                            preferred_element_type=jnp.float32)

    @pl.when(j == pl.num_programs(1) - 1)
    def _finalize():
        o_ref[...] = (acc_ref[...] + b2_ref[...]).astype(o_ref.dtype)


def feed_forward(x2d, w1, b1, w2, b2, *, tm=_ROW_TILE, tf=None):
    m, d_model = x2d.shape
    d_ff = w1.shape[0]
    xp, tm, mp = _row_tile_and_pad(x2d, tm)
    if tf is None:
        tf = _pick_ff_tile(d_ff)
    w1t = w1.T.astype(jnp.bfloat16)                   # (d_model, d_ff)
    w2t = w2.T.astype(jnp.bfloat16)                   # (d_ff, d_model)
    b1r = b1.reshape(1, d_ff).astype(jnp.float32)
    b2r = b2.reshape(1, d_model).astype(jnp.float32)
    cost = pl.CostEstimate(
        flops=int(4 * mp * d_model * d_ff),
        transcendentals=0,
        bytes_accessed=int(2 * mp * d_model * 4 + 2 * d_model * d_ff * 2
                           + (d_ff + d_model) * 4),
    )
    out = pl.pallas_call(
        _ffn_kernel,
        out_shape=jax.ShapeDtypeStruct((mp, d_model), x2d.dtype),
        grid_spec=pltpu.PrefetchScalarGridSpec(
            num_scalar_prefetch=0,
            grid=(pl.cdiv(mp, tm), pl.cdiv(d_ff, tf)),          # reduction axis last
            in_specs=[
                pl.BlockSpec((tm, d_model), lambda i, j: (i, 0)),
                pl.BlockSpec((d_model, tf), lambda i, j: (0, j)),
                pl.BlockSpec((1, tf), lambda i, j: (0, j)),
                pl.BlockSpec((tf, d_model), lambda i, j: (j, 0)),
                pl.BlockSpec((1, d_model), lambda i, j: (0, 0)),
            ],
            out_specs=pl.BlockSpec((tm, d_model), lambda i, j: (i, 0)),
            scratch_shapes=[pltpu.VMEM((tm, d_model), jnp.float32)],
        ),
        compiler_params=_compiler_params(("parallel", "arbitrary")),
        cost_estimate=cost,
    )(xp, w1t, b1r, w2t, b2r)
    return out[:m]


# ---------------------------------------------------------------------------
# Scaled dot-product attention core: one batch element (all heads) per grid step.
# mask follows torch masked_fill(mask == 0, -1e9) semantics.
# ---------------------------------------------------------------------------
def _attention_kernel(q_ref, k_ref, v_ref, m_ref, o_ref, *, scale):
    q = q_ref[...].astype(jnp.bfloat16)          # (h, S, d_k)
    k = k_ref[...].astype(jnp.bfloat16)
    v = v_ref[...].astype(jnp.bfloat16)
    s = jnp.einsum("hqd,hkd->hqk", q, k,
                   preferred_element_type=jnp.float32) * scale          # (h, S, S) f32
    msk = m_ref[...]                                                     # (1, S): 1 keep, 0 mask
    s = jnp.where(msk == 0.0, -1e9, s)                                   # broadcast (h, Sq, Sk)
    s = s - jnp.max(s, axis=-1, keepdims=True)
    p = jnp.exp(s)
    p = p / jnp.sum(p, axis=-1, keepdims=True)
    # TODO(synk): attention dropout (eval mode == identity) not emitted.
    o = jnp.einsum("hqk,hkd->hqd", p.astype(jnp.bfloat16), v,
                   preferred_element_type=jnp.float32)
    o_ref[...] = o.astype(o_ref.dtype)


def attention_core(q, k, v, mask):
    batch, h, seq, d_k = q.shape
    scale = 1.0 / math.sqrt(d_k)
    return pl.pallas_call(
        functools.partial(_attention_kernel, scale=scale),
        out_shape=jax.ShapeDtypeStruct((batch, h, seq, d_k), q.dtype),
        grid_spec=pltpu.PrefetchScalarGridSpec(
            num_scalar_prefetch=0,
            grid=(batch,),
            in_specs=[
                pl.BlockSpec((None, h, seq, d_k), lambda b: (b, 0, 0, 0)),
                pl.BlockSpec((None, h, seq, d_k), lambda b: (b, 0, 0, 0)),
                pl.BlockSpec((None, h, seq, d_k), lambda b: (b, 0, 0, 0)),
                pl.BlockSpec((None, 1, seq), lambda b: (b, 0, 0)),
            ],
            out_specs=pl.BlockSpec((None, h, seq, d_k), lambda b: (b, 0, 0, 0)),
        ),
        compiler_params=_compiler_params(("parallel",)),
    )(q, k, v, mask)


# ---------------------------------------------------------------------------
# Multi-head attention + EncoderLayer orchestration (residuals / reshapes in XLA)
# ---------------------------------------------------------------------------
def multi_head_attention(x2d, mask, p, *, batch, seq, n_heads):
    d_model = x2d.shape[-1]
    d_k = d_model // n_heads
    # Fused Q/K/V projection: one lane-denser matmul instead of three.
    wqkv = jnp.concatenate([p["wq"], p["wk"], p["wv"]], axis=0)    # (3*d_model, d_model)
    bqkv = jnp.concatenate([p["bq"], p["bk"], p["bv"]], axis=0)    # (3*d_model,)
    qkv = linear(x2d, wqkv, bqkv)                                  # (M, 3*d_model)
    q, k, v = jnp.split(qkv, 3, axis=-1)

    def to_heads(t):
        return t.reshape(batch, seq, n_heads, d_k).transpose(0, 2, 1, 3)

    ctx = attention_core(to_heads(q), to_heads(k), to_heads(v), mask)   # (b, h, S, d_k)
    ctx2d = ctx.transpose(0, 2, 1, 3).reshape(batch * seq, d_model)
    return linear(ctx2d, p["wo"], p["bo"])                              # output projection


def _encoder_layer_impl(x, mask, p, *, n_heads):
    batch, seq, d_model = x.shape
    x2d = x.reshape(batch * seq, d_model)
    # Sublayer 0: pre-norm self-attention + residual (dropout == identity in eval mode)
    xn = layer_norm(x2d, p["ln0_a"], p["ln0_b"])
    x2d = x2d + multi_head_attention(xn, mask, p, batch=batch, seq=seq, n_heads=n_heads)
    # Sublayer 1: pre-norm position-wise FFN + residual
    xn = layer_norm(x2d, p["ln1_a"], p["ln1_b"])
    x2d = x2d + feed_forward(xn, p["w1"], p["b1"], p["w2"], p["b2"])
    return x2d.reshape(batch, seq, d_model)


encoder_layer = jax.jit(_encoder_layer_impl, static_argnames=("n_heads",))


# ---------------------------------------------------------------------------
# Pure-JAX f32 reference (mirrors the PyTorch module exactly, eval mode)
# ---------------------------------------------------------------------------
def _ref_layer_norm(x, a, b, eps=1e-6):
    mu = jnp.mean(x, axis=-1, keepdims=True)
    sigma = jnp.sqrt(jnp.sum((x - mu) ** 2, axis=-1, keepdims=True) / (x.shape[-1] - 1))
    return a * (x - mu) / (sigma + eps) + b


def _ref_mha(xn, mask, p, n_heads):
    batch, seq, d_model = xn.shape
    d_k = d_model // n_heads

    def proj(w, b):
        t = xn @ w.T + b
        return t.reshape(batch, seq, n_heads, d_k).transpose(0, 2, 1, 3)

    q, k, v = proj(p["wq"], p["bq"]), proj(p["wk"], p["bk"]), proj(p["wv"], p["bv"])
    s = jnp.einsum("bhqd,bhkd->bhqk", q, k) / math.sqrt(d_k)
    s = jnp.where(mask[:, None, :, :] == 0, -1e9, s)
    attn = jax.nn.softmax(s, axis=-1)
    o = jnp.einsum("bhqk,bhkd->bhqd", attn, v)
    o = o.transpose(0, 2, 1, 3).reshape(batch, seq, d_model)
    return o @ p["wo"].T + p["bo"]


def _ref_encoder_layer(x, mask, p, n_heads):
    xn = _ref_layer_norm(x, p["ln0_a"], p["ln0_b"])
    x = x + _ref_mha(xn, mask, p, n_heads)
    xn = _ref_layer_norm(x, p["ln1_a"], p["ln1_b"])
    ff = jnp.maximum(xn @ p["w1"].T + p["b1"], 0.0) @ p["w2"].T + p["b2"]
    return x + ff


def _init_linear(key, out_features, in_features):
    """nn.Linear default init: U(-1/sqrt(in), 1/sqrt(in)) for weight and bias."""
    kw, kb = jax.random.split(key)
    bound = 1.0 / math.sqrt(in_features)
    w = jax.random.uniform(kw, (out_features, in_features), jnp.float32, -bound, bound)
    b = jax.random.uniform(kb, (out_features,), jnp.float32, -bound, bound)
    return w, b


if __name__ == "__main__":
    batch, seq, d_model, n_heads, d_ff = 2, 8, 32, 4, 64

    key = jax.random.PRNGKey(0)
    ks = jax.random.split(key, 10)
    x = jax.random.normal(ks[0], (batch, seq, d_model), jnp.float32)

    wq, bq = _init_linear(ks[1], d_model, d_model)
    wk, bk = _init_linear(ks[2], d_model, d_model)
    wv, bv = _init_linear(ks[3], d_model, d_model)
    wo, bo = _init_linear(ks[4], d_model, d_model)
    w1, b1 = _init_linear(ks[5], d_ff, d_model)     # Linear(d_model -> d_ff)
    w2, b2 = _init_linear(ks[6], d_model, d_ff)     # Linear(d_ff -> d_model)
    # LayerNorm params (PyTorch inits to ones/zeros; perturb one pair to exercise them)
    ln0_a = 1.0 + 0.1 * jax.random.normal(ks[7], (d_model,), jnp.float32)
    ln0_b = 0.1 * jax.random.normal(ks[8], (d_model,), jnp.float32)
    ln1_a = jnp.ones((d_model,), jnp.float32)
    ln1_b = jnp.zeros((d_model,), jnp.float32)

    params = dict(wq=wq, bq=bq, wk=wk, bk=bk, wv=wv, bv=bv, wo=wo, bo=bo,
                  w1=w1, b1=b1, w2=w2, b2=b2,
                  ln0_a=ln0_a, ln0_b=ln0_b, ln1_a=ln1_a, ln1_b=ln1_b)

    # Padding mask (1 = attend, 0 = masked); batch 1 masks its last two positions.
    mask = jnp.ones((batch, 1, seq), jnp.float32)
    mask = mask.at[1, 0, 6:].set(0.0)

    out = encoder_layer(x, mask, params, n_heads=n_heads)
    out = jax.block_until_ready(out)

    ref = _ref_encoder_layer(x, mask, params, n_heads)
    assert out.shape == (batch, seq, d_model)
    max_err = float(jnp.max(jnp.abs(out - ref)))
    # bf16 MXU inputs vs f32 reference -> modest tolerance.
    assert jnp.allclose(out, ref, atol=5e-2, rtol=5e-2), f"max abs err {max_err}"

    print("KERNEL_OK")
</pallas_src>

<mosaic_0001>
module attributes {stable_mosaic.version = 11 : i64} {
  func.func @_layer_norm_kernel(%arg0: i32, %arg1: memref<16x32xf32, #tpu.memory_space<vmem>>, %arg2: memref<1x32xf32, #tpu.memory_space<vmem>>, %arg3: memref<1x32xf32, #tpu.memory_space<vmem>>, %arg4: memref<16x32xf32, #tpu.memory_space<vmem>>) attributes {dimension_semantics = [#tpu.dimension_semantics<parallel>], iteration_bounds = array<i64: 1>, scalar_prefetch = 0 : i64, scratch_operands = 0 : i64, tpu.core_type = #tpu.core_type<tc>, window_params = [{transform_indices = @transform_0, window_bounds = array<i64: 16, 32>}, {pipeline_mode = #tpu.pipeline_mode<synchronous>, transform_indices = @transform_1, window_bounds = array<i64: 1, 32>}, {pipeline_mode = #tpu.pipeline_mode<synchronous>, transform_indices = @transform_2, window_bounds = array<i64: 1, 32>}, {transform_indices = @transform_3, window_bounds = array<i64: 16, 32>}]} {
    %c0 = arith.constant 0 : index
    %c0_0 = arith.constant 0 : index
    %0 = vector.load %arg1[%c0, %c0_0] : memref<16x32xf32, #tpu.memory_space<vmem>>, vector<16x32xf32>
    %cst = arith.constant dense<0.000000e+00> : vector<16xf32>
    %1 = vector.multi_reduction <add>, %0, %cst [1] : vector<16x32xf32> to vector<16xf32>
    %2 = vector.shape_cast %1 : vector<16xf32> to vector<16x1xf32>
    %cst_1 = arith.constant 3.200000e+01 : f32
    %3 = vector.broadcast %cst_1 : f32 to vector<16x1xf32>
    %4 = arith.divf %2, %3 : vector<16x1xf32>
    %5 = vector.broadcast %4 : vector<16x1xf32> to vector<16x32xf32>
    %6 = arith.subf %0, %5 : vector<16x32xf32>
    %7 = arith.mulf %6, %6 : vector<16x32xf32>
    %cst_2 = arith.constant dense<0.000000e+00> : vector<16xf32>
    %8 = vector.multi_reduction <add>, %7, %cst_2 [1] : vector<16x32xf32> to vector<16xf32>
    %9 = vector.shape_cast %8 : vector<16xf32> to vector<16x1xf32>
    %cst_3 = arith.constant 3.100000e+01 : f32
    %10 = vector.broadcast %cst_3 : f32 to vector<16x1xf32>
    %11 = arith.divf %9, %10 : vector<16x1xf32>
    %12 = math.sqrt %11 : vector<16x1xf32>
    %c0_4 = arith.constant 0 : index
    %c0_5 = arith.constant 0 : index
    %13 = vector.load %arg2[%c0_4, %c0_5] : memref<1x32xf32, #tpu.memory_space<vmem>>, vector<1x32xf32>
    %14 = vector.broadcast %13 : vector<1x32xf32> to vector<16x32xf32>
    %15 = arith.mulf %14, %6 : vector<16x32xf32>
    %cst_6 = arith.constant 9.99999997E-7 : f32
    %16 = vector.broadcast %cst_6 : f32 to vector<16x1xf32>
    %17 = arith.addf %12, %16 : vector<16x1xf32>
    %18 = vector.broadcast %17 : vector<16x1xf32> to vector<16x32xf32>
    %19 = arith.divf %15, %18 : vector<16x32xf32>
    %c0_7 = arith.constant 0 : index
    %c0_8 = arith.constant 0 : index
    %20 = vector.load %arg3[%c0_7, %c0_8] : memref<1x32xf32, #tpu.memory_space<vmem>>, vector<1x32xf32>
    %21 = vector.broadcast %20 : vector<1x32xf32> to vector<16x32xf32>
    %22 = arith.addf %19, %21 : vector<16x32xf32>
    %c0_9 = arith.constant 0 : index
    %c0_10 = arith.constant 0 : index
    %23 = vector.load %arg4[%c0_9, %c0_10] : memref<16x32xf32, #tpu.memory_space<vmem>>, vector<16x32xf32>
    tpu.vector_store %arg4[%c0_9, %c0_10], %22 {strides = array<i32>} : memref<16x32xf32, #tpu.memory_space<vmem>>, vector<16x32xf32>,
    return
  }
  func.func @transform_0(%arg0: i32) -> (i32, i32) {
    %c0_i32 = arith.constant 0 : i32
    %c0_i32_0 = arith.constant 0 : i32
    return %arg0, %c0_i32 : i32, i32
  }
  func.func @transform_1(%arg0: i32) -> (i32, i32) {
    %c0_i32 = arith.constant 0 : i32
    %c0_i32_0 = arith.constant 0 : i32
    %c0_i32_1 = arith.constant 0 : i32
    return %c0_i32, %c0_i32_0 : i32, i32
  }
  func.func @transform_2(%arg0: i32) -> (i32, i32) {
    %c0_i32 = arith.constant 0 : i32
    %c0_i32_0 = arith.constant 0 : i32
    %c0_i32_1 = arith.constant 0 : i32
    return %c0_i32, %c0_i32_0 : i32, i32
  }
  func.func @transform_3(%arg0: i32) -> (i32, i32) {
    %c0_i32 = arith.constant 0 : i32
    %c0_i32_0 = arith.constant 0 : i32
    return %arg0, %c0_i32 : i32, i32
  }
}

module attributes {stable_mosaic.version = 11 : i64} {
  func.func @_linear_kernel(%arg0: i32, %arg1: memref<16x32xf32, #tpu.memory_space<vmem>>, %arg2: memref<32x96xbf16, #tpu.memory_space<vmem>>, %arg3: memref<1x96xf32, #tpu.memory_space<vmem>>, %arg4: memref<16x96xf32, #tpu.memory_space<vmem>>) attributes {dimension_semantics = [#tpu.dimension_semantics<parallel>], iteration_bounds = array<i64: 1>, scalar_prefetch = 0 : i64, scratch_operands = 0 : i64, tpu.core_type = #tpu.core_type<tc>, window_params = [{transform_indices = @transform_0, window_bounds = array<i64: 16, 32>}, {pipeline_mode = #tpu.pipeline_mode<synchronous>, transform_indices = @transform_1, window_bounds = array<i64: 32, 96>}, {pipeline_mode = #tpu.pipeline_mode<synchronous>, transform_indices = @transform_2, window_bounds = array<i64: 1, 96>}, {transform_indices = @transform_3, window_bounds = array<i64: 16, 96>}]} {
    %c0 = arith.constant 0 : index
    %c0_0 = arith.constant 0 : index
    %0 = vector.load %arg1[%c0, %c0_0] : memref<16x32xf32, #tpu.memory_space<vmem>>, vector<16x32xf32>
    %1 = arith.truncf %0 : vector<16x32xf32> to vector<16x32xbf16>
    %c0_1 = arith.constant 0 : index
    %c0_2 = arith.constant 0 : index
    %2 = vector.load %arg2[%c0_1, %c0_2] : memref<32x96xbf16, #tpu.memory_space<vmem>>, vector<32x96xbf16>
    %cst = arith.constant dense<0.000000e+00> : vector<16x96xf32>
    %3 = tpu.matmul %1, %2, %cst {dimension_numbers = #tpu.dot_dimension_numbers<[1], [0], [0], [1], [0, 0, 1, 1], [], []>} : vector<16x32xbf16>, vector<32x96xbf16>, vector<16x96xf32> -> vector<16x96xf32>
    %c0_3 = arith.constant 0 : index
    %c0_4 = arith.constant 0 : index
    %4 = vector.load %arg3[%c0_3, %c0_4] : memref<1x96xf32, #tpu.memory_space<vmem>>, vector<1x96xf32>
    %5 = vector.broadcast %4 : vector<1x96xf32> to vector<16x96xf32>
    %6 = arith.addf %3, %5 : vector<16x96xf32>
    %c0_5 = arith.constant 0 : index
    %c0_6 = arith.constant 0 : index
    %7 = vector.load %arg4[%c0_5, %c0_6] : memref<16x96xf32, #tpu.memory_space<vmem>>, vector<16x96xf32>
    tpu.vector_store %arg4[%c0_5, %c0_6], %6 {strides = array<i32>} : memref<16x96xf32, #tpu.memory_space<vmem>>, vector<16x96xf32>,
    return
  }
  func.func @transform_0(%arg0: i32) -> (i32, i32) {
    %c0_i32 = arith.constant 0 : i32
    %c0_i32_0 = arith.constant 0 : i32
    return %arg0, %c0_i32 : i32, i32
  }
  func.func @transform_1(%arg0: i32) -> (i32, i32) {
    %c0_i32 = arith.constant 0 : i32
    %c0_i32_0 = arith.constant 0 : i32
    %c0_i32_1 = arith.constant 0 : i32
    return %c0_i32, %c0_i32_0 : i32, i32
  }
  func.func @transform_2(%arg0: i32) -> (i32, i32) {
    %c0_i32 = arith.constant 0 : i32
    %c0_i32_0 = arith.constant 0 : i32
    %c0_i32_1 = arith.constant 0 : i32
    return %c0_i32, %c0_i32_0 : i32, i32
  }
  func.func @transform_3(%arg0: i32) -> (i32, i32) {
    %c0_i32 = arith.constant 0 : i32
    %c0_i32_0 = arith.constant 0 : i32
    return %arg0, %c0_i32 : i32, i32
  }
}

module attributes {stable_mosaic.version = 11 : i64} {
  func.func @_attention_kernel(%arg0: i32, %arg1: memref<1x4x8x8xf32, #tpu.memory_space<vmem>>, %arg2: memref<1x4x8x8xf32, #tpu.memory_space<vmem>>, %arg3: memref<1x4x8x8xf32, #tpu.memory_space<vmem>>, %arg4: memref<1x1x8xf32, #tpu.memory_space<vmem>>, %arg5: memref<1x4x8x8xf32, #tpu.memory_space<vmem>>) attributes {dimension_semantics = [#tpu.dimension_semantics<parallel>], iteration_bounds = array<i64: 2>, scalar_prefetch = 0 : i64, scratch_operands = 0 : i64, tpu.core_type = #tpu.core_type<tc>, window_params = [{transform_indices = @transform_0, window_bounds = array<i64: 1, 4, 8, 8>}, {transform_indices = @transform_1, window_bounds = array<i64: 1, 4, 8, 8>}, {transform_indices = @transform_2, window_bounds = array<i64: 1, 4, 8, 8>}, {transform_indices = @transform_3, window_bounds = array<i64: 1, 1, 8>}, {transform_indices = @transform_4, window_bounds = array<i64: 1, 4, 8, 8>}]} {
    %c0 = arith.constant 0 : index
    %c0_0 = arith.constant 0 : index
    %c0_1 = arith.constant 0 : index
    %c0_2 = arith.constant 0 : index
    %0 = vector.load %arg1[%c0, %c0_0, %c0_1, %c0_2] : memref<1x4x8x8xf32, #tpu.memory_space<vmem>>, vector<1x4x8x8xf32>
    %1 = vector.shape_cast %0 : vector<1x4x8x8xf32> to vector<4x8x8xf32>
    %2 = arith.truncf %1 : vector<4x8x8xf32> to vector<4x8x8xbf16>
    %c0_3 = arith.constant 0 : index
    %c0_4 = arith.constant 0 : index
    %c0_5 = arith.constant 0 : index
    %c0_6 = arith.constant 0 : index
    %3 = vector.load %arg2[%c0_3, %c0_4, %c0_5, %c0_6] : memref<1x4x8x8xf32, #tpu.memory_space<vmem>>, vector<1x4x8x8xf32>
    %4 = vector.shape_cast %3 : vector<1x4x8x8xf32> to vector<4x8x8xf32>
    %5 = arith.truncf %4 : vector<4x8x8xf32> to vector<4x8x8xbf16>
    %c0_7 = arith.constant 0 : index
    %c0_8 = arith.constant 0 : index
    %c0_9 = arith.constant 0 : index
    %c0_10 = arith.constant 0 : index
    %6 = vector.load %arg3[%c0_7, %c0_8, %c0_9, %c0_10] : memref<1x4x8x8xf32, #tpu.memory_space<vmem>>, vector<1x4x8x8xf32>
    %7 = vector.shape_cast %6 : vector<1x4x8x8xf32> to vector<4x8x8xf32>
    %8 = arith.truncf %7 : vector<4x8x8xf32> to vector<4x8x8xbf16>
    "tpu.trace_start"() <{level = 10 : i32, message = "hqd,hkd->hqk"}> : () -> ()
    %cst = arith.constant dense<0.000000e+00> : vector<4x8x8xf32>
    %9 = tpu.matmul %2, %5, %cst {dimension_numbers = #tpu.dot_dimension_numbers<[2], [2], [1], [1], [0, 0, 0, 1, 1, 1], [0], [0]>} : vector<4x8x8xbf16>, vector<4x8x8xbf16>, vector<4x8x8xf32> -> vector<4x8x8xf32>
    "tpu.trace_stop"() : () -> ()
    %cst_11 = arith.constant 0.353553385 : f32
    %10 = vector.broadcast %cst_11 : f32 to vector<4x8x8xf32>
    %11 = arith.mulf %9, %10 : vector<4x8x8xf32>
    %c0_12 = arith.constant 0 : index
    %c0_13 = arith.constant 0 : index
    %c0_14 = arith.constant 0 : index
    %12 = vector.load %arg4[%c0_12, %c0_13, %c0_14] : memref<1x1x8xf32, #tpu.memory_space<vmem>>, vector<1x1x8xf32>
    %13 = vector.shape_cast %12 : vector<1x1x8xf32> to vector<1x8xf32>
    %cst_15 = arith.constant 0.000000e+00 : f32
    %14 = vector.broadcast %cst_15 : f32 to vector<1x8xf32>
    %15 = arith.cmpf oeq, %13, %14 : vector<1x8xf32>
    %cst_16 = arith.constant -1.000000e+09 : f32
    %16 = vector.shape_cast %15 : vector<1x8xi1> to vector<1x1x8xi1>
    %17 = vector.broadcast %16 : vector<1x1x8xi1> to vector<4x8x8xi1>
    %18 = vector.broadcast %cst_16 : f32 to vector<4x8x8xf32>
    %19 = arith.select %17, %18, %11 : vector<4x8x8xi1>, vector<4x8x8xf32>
    %cst_17 = arith.constant dense<0xFF800000> : vector<4x8xf32>
    %20 = vector.multi_reduction <maximumf>, %19, %cst_17 [2] : vector<4x8x8xf32> to vector<4x8xf32>
    %21 = vector.shape_cast %20 : vector<4x8xf32> to vector<4x8x1xf32>
    %22 = vector.broadcast %21 : vector<4x8x1xf32> to vector<4x8x8xf32>
    %23 = arith.subf %19, %22 : vector<4x8x8xf32>
    %24 = math.exp %23 : vector<4x8x8xf32>
    %cst_18 = arith.constant dense<0.000000e+00> : vector<4x8xf32>
    %25 = vector.multi_reduction <add>, %24, %cst_18 [2] : vector<4x8x8xf32> to vector<4x8xf32>
    %26 = vector.shape_cast %25 : vector<4x8xf32> to vector<4x8x1xf32>
    %27 = vector.broadcast %26 : vector<4x8x1xf32> to vector<4x8x8xf32>
    %28 = arith.divf %24, %27 : vector<4x8x8xf32>
    %29 = arith.truncf %28 : vector<4x8x8xf32> to vector<4x8x8xbf16>
    "tpu.trace_start"() <{level = 10 : i32, message = "hqk,hkd->hqd"}> : () -> ()
    %cst_19 = arith.constant dense<0.000000e+00> : vector<4x8x8xf32>
    %30 = tpu.matmul %29, %8, %cst_19 {dimension_numbers = #tpu.dot_dimension_numbers<[2], [1], [1], [2], [0, 0, 0, 1, 1, 2], [0], [0]>} : vector<4x8x8xbf16>, vector<4x8x8xbf16>, vector<4x8x8xf32> -> vector<4x8x8xf32>
    "tpu.trace_stop"() : () -> ()
    %c0_20 = arith.constant 0 : index
    %c0_21 = arith.constant 0 : index
    %c0_22 = arith.constant 0 : index
    %c0_23 = arith.constant 0 : index
    %31 = vector.load %arg5[%c0_20, %c0_21, %c0_22, %c0_23] : memref<1x4x8x8xf32, #tpu.memory_space<vmem>>, vector<1x4x8x8xf32>
    %32 = vector.shape_cast %31 : vector<1x4x8x8xf32> to vector<4x8x8xf32>
    %33 = vector.shape_cast %30 : vector<4x8x8xf32> to vector<1x4x8x8xf32>
    tpu.vector_store %arg5[%c0_20, %c0_21, %c0_22, %c0_23], %33 {strides = array<i32>} : memref<1x4x8x8xf32, #tpu.memory_space<vmem>>, vector<1x4x8x8xf32>,
    return
  }
  func.func @transform_0(%arg0: i32) -> (i32, i32, i32, i32) {
    %c0_i32 = arith.constant 0 : i32
    %c0_i32_0 = arith.constant 0 : i32
    %c0_i32_1 = arith.constant 0 : i32
    %c0_i32_2 = arith.constant 0 : i32
    return %arg0, %c0_i32, %c0_i32_0, %c0_i32_1 : i32, i32, i32, i32
  }
  func.func @transform_1(%arg0: i32) -> (i32, i32, i32, i32) {
    %c0_i32 = arith.constant 0 : i32
    %c0_i32_0 = arith.constant 0 : i32
    %c0_i32_1 = arith.constant 0 : i32
    %c0_i32_2 = arith.constant 0 : i32
    return %arg0, %c0_i32, %c0_i32_0, %c0_i32_1 : i32, i32, i32, i32
  }
  func.func @transform_2(%arg0: i32) -> (i32, i32, i32, i32) {
    %c0_i32 = arith.constant 0 : i32
    %c0_i32_0 = arith.constant 0 : i32
    %c0_i32_1 = arith.constant 0 : i32
    %c0_i32_2 = arith.constant 0 : i32
    return %arg0, %c0_i32, %c0_i32_0, %c0_i32_1 : i32, i32, i32, i32
  }
  func.func @transform_3(%arg0: i32) -> (i32, i32, i32) {
    %c0_i32 = arith.constant 0 : i32
    %c0_i32_0 = arith.constant 0 : i32
    %c0_i32_1 = arith.constant 0 : i32
    return %arg0, %c0_i32, %c0_i32_0 : i32, i32, i32
  }
  func.func @transform_4(%arg0: i32) -> (i32, i32, i32, i32) {
    %c0_i32 = arith.constant 0 : i32
    %c0_i32_0 = arith.constant 0 : i32
    %c0_i32_1 = arith.constant 0 : i32
    %c0_i32_2 = arith.constant 0 : i32
    return %arg0, %c0_i32, %c0_i32_0, %c0_i32_1 : i32, i32, i32, i32
  }
}

module attributes {stable_mosaic.version = 11 : i64} {
  func.func @_linear_kernel(%arg0: i32, %arg1: memref<16x32xf32, #tpu.memory_space<vmem>>, %arg2: memref<32x32xbf16, #tpu.memory_space<vmem>>, %arg3: memref<1x32xf32, #tpu.memory_space<vmem>>, %arg4: memref<16x32xf32, #tpu.memory_space<vmem>>) attributes {dimension_semantics = [#tpu.dimension_semantics<parallel>], iteration_bounds = array<i64: 1>, scalar_prefetch = 0 : i64, scratch_operands = 0 : i64, tpu.core_type = #tpu.core_type<tc>, window_params = [{transform_indices = @transform_0, window_bounds = array<i64: 16, 32>}, {pipeline_mode = #tpu.pipeline_mode<synchronous>, transform_indices = @transform_1, window_bounds = array<i64: 32, 32>}, {pipeline_mode = #tpu.pipeline_mode<synchronous>, transform_indices = @transform_2, window_bounds = array<i64: 1, 32>}, {transform_indices = @transform_3, window_bounds = array<i64: 16, 32>}]} {
    %c0 = arith.constant 0 : index
    %c0_0 = arith.constant 0 : index
    %0 = vector.load %arg1[%c0, %c0_0] : memref<16x32xf32, #tpu.memory_space<vmem>>, vector<16x32xf32>
    %1 = arith.truncf %0 : vector<16x32xf32> to vector<16x32xbf16>
    %c0_1 = arith.constant 0 : index
    %c0_2 = arith.constant 0 : index
    %2 = vector.load %arg2[%c0_1, %c0_2] : memref<32x32xbf16, #tpu.memory_space<vmem>>, vector<32x32xbf16>
    %cst = arith.constant dense<0.000000e+00> : vector<16x32xf32>
    %3 = tpu.matmul %1, %2, %cst {dimension_numbers = #tpu.dot_dimension_numbers<[1], [0], [0], [1], [0, 0, 1, 1], [], []>} : vector<16x32xbf16>, vector<32x32xbf16>, vector<16x32xf32> -> vector<16x32xf32>
    %c0_3 = arith.constant 0 : index
    %c0_4 = arith.constant 0 : index
    %4 = vector.load %arg3[%c0_3, %c0_4] : memref<1x32xf32, #tpu.memory_space<vmem>>, vector<1x32xf32>
    %5 = vector.broadcast %4 : vector<1x32xf32> to vector<16x32xf32>
    %6 = arith.addf %3, %5 : vector<16x32xf32>
    %c0_5 = arith.constant 0 : index
    %c0_6 = arith.constant 0 : index
    %7 = vector.load %arg4[%c0_5, %c0_6] : memref<16x32xf32, #tpu.memory_space<vmem>>, vector<16x32xf32>
    tpu.vector_store %arg4[%c0_5, %c0_6], %6 {strides = array<i32>} : memref<16x32xf32, #tpu.memory_space<vmem>>, vector<16x32xf32>,
    return
  }
  func.func @transform_0(%arg0: i32) -> (i32, i32) {
    %c0_i32 = arith.constant 0 : i32
    %c0_i32_0 = arith.constant 0 : i32
    return %arg0, %c0_i32 : i32, i32
  }
  func.func @transform_1(%arg0: i32) -> (i32, i32) {
    %c0_i32 = arith.constant 0 : i32
    %c0_i32_0 = arith.constant 0 : i32
    %c0_i32_1 = arith.constant 0 : i32
    return %c0_i32, %c0_i32_0 : i32, i32
  }
  func.func @transform_2(%arg0: i32) -> (i32, i32) {
    %c0_i32 = arith.constant 0 : i32
    %c0_i32_0 = arith.constant 0 : i32
    %c0_i32_1 = arith.constant 0 : i32
    return %c0_i32, %c0_i32_0 : i32, i32
  }
  func.func @transform_3(%arg0: i32) -> (i32, i32) {
    %c0_i32 = arith.constant 0 : i32
    %c0_i32_0 = arith.constant 0 : i32
    return %arg0, %c0_i32 : i32, i32
  }
}

module attributes {stable_mosaic.version = 11 : i64} {
  func.func @_ffn_kernel(%arg0: i32, %arg1: i32, %arg2: memref<16x32xf32, #tpu.memory_space<vmem>>, %arg3: memref<32x64xbf16, #tpu.memory_space<vmem>>, %arg4: memref<1x64xf32, #tpu.memory_space<vmem>>, %arg5: memref<64x32xbf16, #tpu.memory_space<vmem>>, %arg6: memref<1x32xf32, #tpu.memory_space<vmem>>, %arg7: memref<16x32xf32, #tpu.memory_space<vmem>>, %arg8: memref<16x32xf32, #tpu.memory_space<vmem>>) attributes {dimension_semantics = [#tpu.dimension_semantics<parallel>, #tpu.dimension_semantics<arbitrary>], iteration_bounds = array<i64: 1, 1>, scalar_prefetch = 0 : i64, scratch_operands = 1 : i64, tpu.core_type = #tpu.core_type<tc>, window_params = [{transform_indices = @transform_0, window_bounds = array<i64: 16, 32>}, {transform_indices = @transform_1, window_bounds = array<i64: 32, 64>}, {transform_indices = @transform_2, window_bounds = array<i64: 1, 64>}, {transform_indices = @transform_3, window_bounds = array<i64: 64, 32>}, {pipeline_mode = #tpu.pipeline_mode<synchronous>, transform_indices = @transform_4, window_bounds = array<i64: 1, 32>}, {transform_indices = @transform_5, window_bounds = array<i64: 16, 32>}]} {
    %c0_i32 = arith.constant 0 : i32
    %0 = arith.cmpi eq, %arg1, %c0_i32 : i32
    %1 = arith.extui %0 : i1 to i32
    %c0_i32_0 = arith.constant 0 : i32
    %2 = arith.cmpi ne, %1, %c0_i32_0 : i32
    scf.if %2 {
      %cst_16 = arith.constant 0.000000e+00 : f32
      %21 = vector.broadcast %cst_16 : f32 to vector<16x32xf32>
      %c0_17 = arith.constant 0 : index
      %c0_18 = arith.constant 0 : index
      %22 = vector.load %arg8[%c0_17, %c0_18] : memref<16x32xf32, #tpu.memory_space<vmem>>, vector<16x32xf32>
      tpu.vector_store %arg8[%c0_17, %c0_18], %21 {strides = array<i32>} : memref<16x32xf32, #tpu.memory_space<vmem>>, vector<16x32xf32>,
    } else {
    }
    %c0 = arith.constant 0 : index
    %c0_1 = arith.constant 0 : index
    %3 = vector.load %arg2[%c0, %c0_1] : memref<16x32xf32, #tpu.memory_space<vmem>>, vector<16x32xf32>
    %4 = arith.truncf %3 : vector<16x32xf32> to vector<16x32xbf16>
    %c0_2 = arith.constant 0 : index
    %c0_3 = arith.constant 0 : index
    %5 = vector.load %arg3[%c0_2, %c0_3] : memref<32x64xbf16, #tpu.memory_space<vmem>>, vector<32x64xbf16>
    %cst = arith.constant dense<0.000000e+00> : vector<16x64xf32>
    %6 = tpu.matmul %4, %5, %cst {dimension_numbers = #tpu.dot_dimension_numbers<[1], [0], [0], [1], [0, 0, 1, 1], [], []>} : vector<16x32xbf16>, vector<32x64xbf16>, vector<16x64xf32> -> vector<16x64xf32>
    %c0_4 = arith.constant 0 : index
    %c0_5 = arith.constant 0 : index
    %7 = vector.load %arg4[%c0_4, %c0_5] : memref<1x64xf32, #tpu.memory_space<vmem>>, vector<1x64xf32>
    %8 = vector.broadcast %7 : vector<1x64xf32> to vector<16x64xf32>
    %9 = arith.addf %6, %8 : vector<16x64xf32>
    %cst_6 = arith.constant 0.000000e+00 : f32
    %10 = vector.broadcast %cst_6 : f32 to vector<16x64xf32>
    %11 = arith.maximumf %9, %10 : vector<16x64xf32>
    %c0_7 = arith.constant 0 : index
    %c0_8 = arith.constant 0 : index
    %12 = vector.load %arg8[%c0_7, %c0_8] : memref<16x32xf32, #tpu.memory_space<vmem>>, vector<16x32xf32>
    %13 = arith.truncf %11 : vector<16x64xf32> to vector<16x64xbf16>
    %c0_9 = arith.constant 0 : index
    %c0_10 = arith.constant 0 : index
    %14 = vector.load %arg5[%c0_9, %c0_10] : memref<64x32xbf16, #tpu.memory_space<vmem>>, vector<64x32xbf16>
    %cst_11 = arith.constant dense<0.000000e+00> : vector<16x32xf32>
    %15 = tpu.matmul %13, %14, %cst_11 {dimension_numbers = #tpu.dot_dimension_numbers<[1], [0], [0], [1], [0, 0, 1, 1], [], []>} : vector<16x64xbf16>, vector<64x32xbf16>, vector<16x32xf32> -> vector<16x32xf32>
    %16 = arith.addf %12, %15 : vector<16x32xf32>
    %c0_12 = arith.constant 0 : index
    %c0_13 = arith.constant 0 : index
    %17 = vector.load %arg8[%c0_12, %c0_13] : memref<16x32xf32, #tpu.memory_space<vmem>>, vector<16x32xf32>
    tpu.vector_store %arg8[%c0_12, %c0_13], %16 {strides = array<i32>} : memref<16x32xf32, #tpu.memory_space<vmem>>, vector<16x32xf32>,
    %c0_i32_14 = arith.constant 0 : i32
    %18 = arith.cmpi eq, %arg1, %c0_i32_14 : i32
    %19 = arith.extui %18 : i1 to i32
    %c0_i32_15 = arith.constant 0 : i32
    %20 = arith.cmpi ne, %19, %c0_i32_15 : i32
    scf.if %20 {
      %c0_16 = arith.constant 0 : index
      %c0_17 = arith.constant 0 : index
      %21 = vector.load %arg8[%c0_16, %c0_17] : memref<16x32xf32, #tpu.memory_space<vmem>>, vector<16x32xf32>
      %c0_18 = arith.constant 0 : index
      %c0_19 = arith.constant 0 : index
      %22 = vector.load %arg6[%c0_18, %c0_19] : memref<1x32xf32, #tpu.memory_space<vmem>>, vector<1x32xf32>
      %23 = vector.broadcast %22 : vector<1x32xf32> to vector<16x32xf32>
      %24 = arith.addf %21, %23 : vector<16x32xf32>
      %c0_20 = arith.constant 0 : index
      %c0_21 = arith.constant 0 : index
      %25 = vector.load %arg7[%c0_20, %c0_21] : memref<16x32xf32, #tpu.memory_space<vmem>>, vector<16x32xf32>
      tpu.vector_store %arg7[%c0_20, %c0_21], %24 {strides = array<i32>} : memref<16x32xf32, #tpu.memory_space<vmem>>, vector<16x32xf32>,
    } else {
    }
    return
  }
  func.func @transform_0(%arg0: i32, %arg1: i32) -> (i32, i32) {
    %c0_i32 = arith.constant 0 : i32
    %c0_i32_0 = arith.constant 0 : i32
    return %arg0, %c0_i32 : i32, i32
  }
  func.func @transform_1(%arg0: i32, %arg1: i32) -> (i32, i32) {
    %c0_i32 = arith.constant 0 : i32
    %c0_i32_0 = arith.constant 0 : i32
    return %c0_i32, %arg1 : i32, i32
  }
  func.func @transform_2(%arg0: i32, %arg1: i32) -> (i32, i32) {
    %c0_i32 = arith.constant 0 : i32
    %c0_i32_0 = arith.constant 0 : i32
    return %c0_i32, %arg1 : i32, i32
  }
  func.func @transform_3(%arg0: i32, %arg1: i32) -> (i32, i32) {
    %c0_i32 = arith.constant 0 : i32
    %c0_i32_0 = arith.constant 0 : i32
    return %arg1, %c0_i32 : i32, i32
  }
  func.func @transform_4(%arg0: i32, %arg1: i32) -> (i32, i32) {
    %c0_i32 = arith.constant 0 : i32
    %c0_i32_0 = arith.constant 0 : i32
    %c0_i32_1 = arith.constant 0 : i32
    return %c0_i32, %c0_i32_0 : i32, i32
  }
  func.func @transform_5(%arg0: i32, %arg1: i32) -> (i32, i32) {
    %c0_i32 = arith.constant 0 : i32
    %c0_i32_0 = arith.constant 0 : i32
    return %arg0, %c0_i32 : i32, i32
  }
}

</mosaic_0001>

<llo_original>
// kernel: _encoder_layer_impl.6
$region0: #{_encoder_layer_impl.6}
  #allocation0 [shape = 'u32[]', space=smem, size = 0x4, offset = 0x4, fixed_abs, tag = 'smem constant byte address 0x4 - core index']
  #allocation1 [shape = 'u32[144,128]{1,0:T(1,128)}', space=vmem, size = 0x12000, scoped, tag = 'internal scratch']
  %s0 = inlined_call_operand.vmem [shape: f32[16,32], index: 0, kind: input, shape index: {}]
  %s1 = inlined_call_operand.vmem [shape: f32[1,32], index: 1, kind: input, shape index: {}]
  %s2 = inlined_call_operand.vmem [shape: f32[1,32], index: 2, kind: input, shape index: {}]
  %s3 = inlined_call_operand.vmem [shape: f32[16,32], index: 3, kind: output, shape index: {}]
  %s4 = sld [smem:[#allocation0]]
  $region22: #{_encoder_layer_impl.6} parent=0
    _
  %s6 = ssub.s32 1, %s4
  %s7 = scalar_select 0, %s6, %s4
  // Predicated region
  $region2: #{_encoder_layer_impl.6} parent=0 // pred_check
    _
  $region3: #{_encoder_layer_impl.6} parent=0 // pred_check_branch
    %9 = sbr.rel (0) target = $region5
  $region4: #{_encoder_layer_impl.6} parent=0 // pred_region
    _
  $region5: #{_encoder_layer_impl.6} parent=0 // pred_fallthru
    _
  // Predicated region
  $region6: #{_encoder_layer_impl.6} parent=0 // pred_check
    _
  $region7: #{_encoder_layer_impl.6} parent=0 // pred_check_branch
    %11 = sbr.rel (0) target = $region9
  $region8: #{_encoder_layer_impl.6} parent=0 // pred_region
    _
  $region9: #{_encoder_layer_impl.6} parent=0 // pred_fallthru
    _
  // Predicated region
  $region10: #{_encoder_layer_impl.6} parent=0 // pred_check
    _
  $region11: #{_encoder_layer_impl.6} parent=0 // pred_check_branch
    %13 = sbr.rel (0) target = $region13
  $region12: #{_encoder_layer_impl.6} parent=0 // pred_region
    _
  $region13: #{_encoder_layer_impl.6} parent=0 // pred_fallthru
    _
  %v14 = vld [vmem:[%s0] sm:$0xff]
  %v15 = vld [vmem:[%s0 + $0x8] sm:$0xff]
  %vm16 = vcmask 261120
  %v17 = vsel %vm16, %v14, 0.0
  %18 = vadd.xlane.f32.xlu0 %v17
  %v19 = vpop.xlane.xlu0 %18
  %v20 = vsel %vm16, %v15, 0.0
  %21 = vadd.xlane.f32.xlu0 %v20
  %v22 = vpop.xlane.xlu0 %21
  %v23 = vrcp.pop 32.0
  %v24 = vmul.f32 %v19, %v23
  %v25 = vmul.f32 %v22, %v23
  %v26 = vsub.f32 %v14, %v24
  %v27 = vsub.f32 %v15, %v25
  %v28 = vmul.f32 %v26, %v26
  %v29 = vmul.f32 %v27, %v27
  %v30 = vsel %vm16, %v28, 0.0
  %31 = vadd.xlane.f32.xlu0 %v30
  %v32 = vpop.xlane.xlu0 %31
  %v33 = vsel %vm16, %v29, 0.0
  %34 = vadd.xlane.f32.xlu0 %v33
  %v35 = vpop.xlane.xlu0 %34
  %v36 = vrcp.pop 31.0
  %v37 = vmul.f32 %v32, %v36
  %v38 = vmul.f32 %v35, %v36
  %v39 = vrsqrt.pop %v37
  %v40 = vmul.f32 %v37, %v39
  %vm41 = vcmp.eq.f32.partialorder %v37, inf
  %v42 = vsel %vm41, %v37, %v40
  %vm43 = vcmp.eq.f32.partialorder %v37, 0.0
  %v44 = vand.u32 %v37, 2147483648
  %v45 = vsel %vm43, %v44, %v42
  %v46 = vrsqrt.pop %v38
  %v47 = vmul.f32 %v38, %v46
  %vm48 = vcmp.eq.f32.partialorder %v38, inf
  %v49 = vsel %vm48, %v38, %v47
  %vm50 = vcmp.eq.f32.partialorder %v38, 0.0
  %v51 = vand.u32 %v38, 2147483648
  %v52 = vsel %vm50, %v51, %v49
  %v53 = vld [vmem:[%s1] sm:$0x1]
  %v55 = vlaneseq
  %v56 = vshrl.u32 %v55, 7
  %v57 = vsub.s32 0, %v56
  %v58 = vrot.slane %v53, %v57
  %v60 = vmul.f32 %v58, %v26
  %v61 = vmul.f32 %v58, %v27
  %v62 = vadd.f32 %v45, 1e-06
  %v63 = vadd.f32 %v52, 1e-06
  %v64 = vrcp.pop %v62
  %v65 = vmul.f32 %v60, %v64
  %v66 = vrcp.pop %v63
  %v67 = vmul.f32 %v61, %v66
  %v68 = vld [vmem:[%s2] sm:$0x1]
  %v70 = vlaneseq
  %v71 = vshrl.u32 %v70, 7
  %v72 = vsub.s32 0, %v71
  %v73 = vrot.slane %v68, %v72
  %v75 = vadd.f32 %v65, %v73
  %v76 = vadd.f32 %v67, %v73
  %77 = vst.msk [vmem:[%s3] sm:$0xff] %vm16, %v75
  %78 = vst.msk [vmem:[%s3 + $0x8] sm:$0xff] %vm16, %v76
  // Predicated region
  $region14: #{_encoder_layer_impl.6} parent=0 // pred_check
    _
  $region15: #{_encoder_layer_impl.6} parent=0 // pred_check_branch
    %80 = sbr.rel (0) target = $region17
  $region16: #{_encoder_layer_impl.6} parent=0 // pred_region
    _
  $region17: #{_encoder_layer_impl.6} parent=0 // pred_fallthru
    _
  // Predicated region
  $region18: #{_encoder_layer_impl.6} parent=0 // pred_check
    _
  $region19: #{_encoder_layer_impl.6} parent=0 // pred_check_branch
    %82 = sbr.rel (0) target = $region21
  $region20: #{_encoder_layer_impl.6} parent=0 // pred_region
    _
  $region21: #{_encoder_layer_impl.6} parent=0 // pred_fallthru
    _

// kernel: _encoder_layer_impl.7
$region0: #{_encoder_layer_impl.7}
  #allocation0 [shape = 'u32[]', space=smem, size = 0x4, offset = 0x4, fixed_abs, tag = 'smem constant byte address 0x4 - core index']
  #allocation1 [shape = 'u32[144,128]{1,0:T(1,128)}', space=vmem, size = 0x12000, scoped, tag = 'internal scratch']
  %s0 = inlined_call_operand.vmem [shape: f32[16,32], index: 0, kind: input, shape index: {}]
  %s1 = inlined_call_operand.vmem [shape: bf16[32,96], index: 1, kind: input, shape index: {}]
  %s2 = inlined_call_operand.vmem [shape: f32[1,96], index: 2, kind: input, shape index: {}]
  %s3 = inlined_call_operand.vmem [shape: f32[16,96], index: 3, kind: output, shape index: {}]
  %s4 = sld [smem:[#allocation0]]
  $region22: #{_encoder_layer_impl.7} parent=0
    _
  %s6 = ssub.s32 1, %s4
  %s7 = scalar_select 0, %s6, %s4
  // Predicated region
  $region2: #{_encoder_layer_impl.7} parent=0 // pred_check
    _
  $region3: #{_encoder_layer_impl.7} parent=0 // pred_check_branch
    %9 = sbr.rel (0) target = $region5
  $region4: #{_encoder_layer_impl.7} parent=0 // pred_region
    _
  $region5: #{_encoder_layer_impl.7} parent=0 // pred_fallthru
    _
  // Predicated region
  $region6: #{_encoder_layer_impl.7} parent=0 // pred_check
    _
  $region7: #{_encoder_layer_impl.7} parent=0 // pred_check_branch
    %11 = sbr.rel (0) target = $region9
  $region8: #{_encoder_layer_impl.7} parent=0 // pred_region
    _
  $region9: #{_encoder_layer_impl.7} parent=0 // pred_fallthru
    _
  // Predicated region
  $region10: #{_encoder_layer_impl.7} parent=0 // pred_check
    _
  $region11: #{_encoder_layer_impl.7} parent=0 // pred_check_branch
    %13 = sbr.rel (0) target = $region13
  $region12: #{_encoder_layer_impl.7} parent=0 // pred_region
    _
  $region13: #{_encoder_layer_impl.7} parent=0 // pred_fallthru
    _
  %v15 = vld [vmem:[%s0] sm:$0xff]
  %v16 = vld [vmem:[%s0 + $0x8] sm:$0xff]
  %v17 = vpack.c.bf16 %v16, %v15
  %v18 = vld [vmem:[%s1] sm:$0xf]
  %v19 = vld [vmem:[%s1 + $0x4] sm:$0xf]
  %v20 = vld [vmem:[%s1 + $0x8] sm:$0xf]
  %v21 = vld [vmem:[%s1 + $0xc] sm:$0xf]
  %v22 = vld [vmem:[%s2] sm:$0x1]
  %v24 = vlaneseq
  %v25 = vshrl.u32 %v24, 7
  %v26 = vsub.s32 0, %v25
  %v27 = vrot.slane %v22, %v26
  %v33 = vunpack.c.l.b16 %v18
  %v34 = vunpack.c.l.b16 %v19
  %v35 = vunpack.c.l.b16 %v20
  %v36 = vunpack.c.l.b16 %v21
  %v37 = vpack.c.b16 %v34, %v33
  %v38 = vpack.c.b16 %v36, %v35
  %vm41 = vcmask 261120
  %v43 = vsel %vm41, %v17, 0
  %45 = vmatprep.subr.bf16.mxu0 0
  %46 = vmatpush1.bf16.msra.mxu0 0
  %47 = vmatprep.subr.bf16.mxu0 0
  %48 = vmatpush1.bf16.msra.mxu0 0
  %49 = vmatprep.subr.bf16.mxu0 0
  %50 = vmatpush1.bf16.msra.mxu0 0
  %51 = vmatprep.subr.bf16.mxu0 0
  %52 = vmatpush1.bf16.msra.mxu0 0
  %53 = vmatprep.subr.bf16.mxu0 0
  %54 = vmatpush1.bf16.msra.mxu0 0
  %55 = vmatprep.subr.bf16.mxu0 0
  %56 = vmatpush1.bf16.msra.mxu0 0
  %57 = vmatprep.subr.bf16.mxu0 0
  %58 = vmatpush1.bf16.msra.mxu0 %v38
  %59 = vmatprep.subr.bf16.mxu0 0
  %60 = vmatpush1.bf16.msra.mxu0 %v37
  %61 = vmatprep.subr.bf16.mxu0 0
  %62 = vmatpush2.bf16.msra.mxu0 0
  %63 = vmatprep.subr.bf16.mxu0 0
  %64 = vmatpush2.bf16.msra.mxu0 0
  %65 = vmatprep.subr.bf16.mxu0 0
  %66 = vmatpush2.bf16.msra.mxu0 0
  %67 = vmatprep.subr.bf16.mxu0 0
  %68 = vmatpush2.bf16.msra.mxu0 0
  %69 = vmatprep.subr.bf16.mxu0 0
  %70 = vmatpush2.bf16.msra.mxu0 0
  %71 = vmatprep.subr.bf16.mxu0 0
  %72 = vmatpush2.bf16.msra.mxu0 0
  %73 = vmatprep.subr.bf16.mxu0 0
  %74 = vmatpush2.bf16.msra.mxu0 0
  %75 = vmatprep.subr.bf16.mxu0 0
  %76 = vmatpush2.bf16.msra.mxu0 0
  %77 = vmatprep.mubr.bf16.mxu0 0
  %78 = vmatmul.mubr.bf16.gmra.mxu0 %v43
  %v79 = vpop.f32.mrf.mxu0
  %v80 = vadd.f32 %v27, %v79
  %v81 = vpop.f32.mrf.mxu0
  %v82 = vpop.f32.mrf.mxu0
  %v83 = vadd.f32 %v27, %v82
  %v84 = vpop.f32.mrf.mxu0
  %85 = vdwg.mxu0
  %vm86 = vcmask 785408
  %87 = vst.msk [vmem:[%s3] sm:$0xff] %vm86, %v80
  %88 = vst.msk [vmem:[%s3 + $0x8] sm:$0xff] %vm86, %v83
  // Predicated region
  $region14: #{_encoder_layer_impl.7} parent=0 // pred_check
    _
  $region15: #{_encoder_layer_impl.7} parent=0 // pred_check_branch
    %90 = sbr.rel (0) target = $region17
  $region16: #{_encoder_layer_impl.7} parent=0 // pred_region
    _
  $region17: #{_encoder_layer_impl.7} parent=0 // pred_fallthru
    _
  // Predicated region
  $region18: #{_encoder_layer_impl.7} parent=0 // pred_check
    _
  $region19: #{_encoder_layer_impl.7} parent=0 // pred_check_branch
    %92 = sbr.rel (0) target = $region21
  $region20: #{_encoder_layer_impl.7} parent=0 // pred_region
    _
  $region21: #{_encoder_layer_impl.7} parent=0 // pred_fallthru
    _

// kernel: _encoder_layer_impl.8
$region0: #{_encoder_layer_impl.8}
  #allocation0 [shape = 'u32[]', space=smem, size = 0x4, offset = 0x4, fixed_abs, tag = 'smem constant byte address 0x4 - core index']
  #allocation1 [shape = 'u32[144,128]{1,0:T(1,128)}', space=vmem, size = 0x12000, scoped, tag = 'internal scratch']
  %s0 = inlined_call_operand.vmem [shape: f32[2,4,8,8], index: 0, kind: input, shape index: {}]
  %s1 = inlined_call_operand.vmem [shape: f32[2,4,8,8], index: 1, kind: input, shape index: {}]
  %s2 = inlined_call_operand.vmem [shape: f32[2,4,8,8], index: 2, kind: input, shape index: {}]
  %s3 = inlined_call_operand.vmem [shape: f32[2,1,8], index: 3, kind: input, shape index: {}]
  %s4 = inlined_call_operand.vmem [shape: f32[2,4,8,8], index: 4, kind: output, shape index: {}]
  %s5 = sld [smem:[#allocation0]]
  $region49: #{_encoder_layer_impl.8} parent=0
    _
  %s7 = ssub.s32 1, %s5
  %s8 = scalar_select 0, %s7, %s5
  loop: start=0, step=1, limit=4
  $region2: #{_encoder_layer_impl.8} parent=0 // loop_pre_header
    _
  $region3: #{_encoder_layer_impl.8} parent=0 // loop_header
    %s10 = sphi 0, %s14
    %p11 = scmp.ge.s32.totalorder %s10, 4
    %s20 = sphi 0, %s22
    %s23 = sphi 0, %s20
    %s24 = sphi 0, %s23
    %s40 = sphi 0, %s24
    %s46 = sphi 0, %s48
    %s49 = sphi 0, %s46
    %s50 = sphi 0, %s49
    %s66 = sphi 0, %s50
    %s72 = sphi 0, %s74
    %s75 = sphi 0, %s72
    %s76 = sphi 0, %s75
    %s92 = sphi 0, %s76
    %s98 = sphi 0, %s100
    %s101 = sphi 0, %s98
    %s102 = sphi 0, %s101
    %s118 = sphi 0, %s102
    %s124 = sphi 0, %s126
    %s127 = sphi 0, %s124
    %s128 = sphi 0, %s127
    %s144 = sphi 0, %s128
  $region4: #{_encoder_layer_impl.8} parent=0 // loop_header_branch
    %13 = sbr.rel (%p11) target = $region8
  $region5: #{_encoder_layer_impl.8} parent=0 // loop_body
    %s15 = ssub.s32 %s10, 1
    %s16 = ssub.s32 %s10, 2
    %s17 = sadd.s32 %s10, 1
    %s18 = ssub.s32 %s10, %s17
    %p19 = scmp.eq.s32.totalorder %s18, 0
    %s21 = sadd.s32 %s20, 1
    %s22 = scalar_select %p19, %s20, %s21
    %p25 = pneg %p19
    %p26 = scmp.eq.s32.totalorder %s10, 1
    %p27 = por %p25, %p26
    %p28 = scmp.ne.s32.totalorder %s20, %s23
    %p29 = scmp.eq.s32.totalorder %s10, 0
    %p30 = por %p28, %p29
    %p31 = scmp.ne.s32.totalorder %s20, %s23
    %p32 = scmp.eq.s32.totalorder %s15, 1
    %p33 = por %p31, %p32
    %p34 = scmp.ne.s32.totalorder %s23, %s24
    %p35 = scmp.eq.s32.totalorder %s15, 0
    %p36 = por %p34, %p35
    %p37 = scmp.ne.s32.totalorder %s23, %s24
    %p38 = scmp.eq.s32.totalorder %s16, 1
    %p39 = por %p37, %p38
    %p41 = scmp.ne.s32.totalorder %s24, %s40
    %p42 = scmp.eq.s32.totalorder %s16, 0
    %p43 = por %p41, %p42
    %s44 = ssub.s32 %s10, %s17
    %p45 = scmp.eq.s32.totalorder %s44, 0
    %s47 = sadd.s32 %s46, 1
    %s48 = scalar_select %p45, %s46, %s47
    %p51 = pneg %p45
    %p52 = scmp.eq.s32.totalorder %s10, 1
    %p53 = por %p51, %p52
    %p54 = scmp.ne.s32.totalorder %s46, %s49
    %p55 = scmp.eq.s32.totalorder %s10, 0
    %p56 = por %p54, %p55
    %p57 = scmp.ne.s32.totalorder %s46, %s49
    %p58 = scmp.eq.s32.totalorder %s15, 1
    %p59 = por %p57, %p58
    %p60 = scmp.ne.s32.totalorder %s49, %s50
    %p61 = scmp.eq.s32.totalorder %s15, 0
    %p62 = por %p60, %p61
    %p63 = scmp.ne.s32.totalorder %s49, %s50
    %p64 = scmp.eq.s32.totalorder %s16, 1
    %p65 = por %p63, %p64
    %p67 = scmp.ne.s32.totalorder %s50, %s66
    %p68 = scmp.eq.s32.totalorder %s16, 0
    %p69 = por %p67, %p68
    %s70 = ssub.s32 %s10, %s17
    %p71 = scmp.eq.s32.totalorder %s70, 0
    %s73 = sadd.s32 %s72, 1
    %s74 = scalar_select %p71, %s72, %s73
    %p77 = pneg %p71
    %p78 = scmp.eq.s32.totalorder %s10, 1
    %p79 = por %p77, %p78
    %p80 = scmp.ne.s32.totalorder %s72, %s75
    %p81 = scmp.eq.s32.totalorder %s10, 0
    %p82 = por %p80, %p81
    %p83 = scmp.ne.s32.totalorder %s72, %s75
    %p84 = scmp.eq.s32.totalorder %s15, 1
    %p85 = por %p83, %p84
    %p86 = scmp.ne.s32.totalorder %s75, %s76
    %p87 = scmp.eq.s32.totalorder %s15, 0
    %p88 = por %p86, %p87
    %p89 = scmp.ne.s32.totalorder %s75, %s76
    %p90 = scmp.eq.s32.totalorder %s16, 1
    %p91 = por %p89, %p90
    %p93 = scmp.ne.s32.totalorder %s76, %s92
    %p94 = scmp.eq.s32.totalorder %s16, 0
    %p95 = por %p93, %p94
    %s96 = ssub.s32 %s10, %s17
    %p97 = scmp.eq.s32.totalorder %s96, 0
    %s99 = sadd.s32 %s98, 1
    %s100 = scalar_select %p97, %s98, %s99
    %p103 = pneg %p97
    %p104 = scmp.eq.s32.totalorder %s10, 1
    %p105 = por %p103, %p104
    %p106 = scmp.ne.s32.totalorder %s98, %s101
    %p107 = scmp.eq.s32.totalorder %s10, 0
    %p108 = por %p106, %p107
    %p109 = scmp.ne.s32.totalorder %s98, %s101
    %p110 = scmp.eq.s32.totalorder %s15, 1
    %p111 = por %p109, %p110
    %p112 = scmp.ne.s32.totalorder %s101, %s102
    %p113 = scmp.eq.s32.totalorder %s15, 0
    %p114 = por %p112, %p113
    %p115 = scmp.ne.s32.totalorder %s101, %s102
    %p116 = scmp.eq.s32.totalorder %s16, 1
    %p117 = por %p115, %p116
    %p119 = scmp.ne.s32.totalorder %s102, %s118
    %p120 = scmp.eq.s32.totalorder %s16, 0
    %p121 = por %p119, %p120
    %s122 = ssub.s32 %s10, %s17
    %p123 = scmp.eq.s32.totalorder %s122, 0
    %s125 = sadd.s32 %s124, 1
    %s126 = scalar_select %p123, %s124, %s125
    %p129 = pneg %p123
    %p130 = scmp.eq.s32.totalorder %s10, 1
    %p131 = por %p129, %p130
    %p132 = scmp.ne.s32.totalorder %s124, %s127
    %p133 = scmp.eq.s32.totalorder %s10, 0
    %p134 = por %p132, %p133
    %p135 = scmp.ne.s32.totalorder %s124, %s127
    %p136 = scmp.eq.s32.totalorder %s15, 1
    %p137 = por %p135, %p136
    %p138 = scmp.ne.s32.totalorder %s127, %s128
    %p139 = scmp.eq.s32.totalorder %s15, 0
    %p140 = por %p138, %p139
    %p141 = scmp.ne.s32.totalorder %s127, %s128
    %p142 = scmp.eq.s32.totalorder %s16, 1
    %p143 = por %p141, %p142
    %p145 = scmp.ne.s32.totalorder %s128, %s144
    %p146 = scmp.eq.s32.totalorder %s16, 0
    %p147 = por %p145, %p146
    %p148 = scmp.le.s32.totalorder 1, %s10
    %p149 = scmp.lt.s32.totalorder %s10, 3
    %p150 = pnand %p148, %p149
    %p151 = pneg %p150
    // Predicated region
    $region9: #{_encoder_layer_impl.8} parent=5 // pred_check
      _
    $region10: #{_encoder_layer_impl.8} parent=5 // pred_check_branch
      %153 = sbr.rel (%p150) target = $region12
    $region11: #{_encoder_layer_impl.8} parent=5 // pred_region
      %s154 = ssub.s32 %s10, 1
    $region12: #{_encoder_layer_impl.8} parent=5 // pred_fallthru
      _
    %p155 = scmp.lt.s32.totalorder %s10, 2
    // Predicated region
    $region13: #{_encoder_layer_impl.8} parent=5 // pred_check
      %p156 = pneg %p155
    $region14: #{_encoder_layer_impl.8} parent=5 // pred_check_branch
      %158 = sbr.rel (%p156) target = $region16
    $region15: #{_encoder_layer_impl.8} parent=5 // pred_region
      // Predicated region
      $region17: #{_encoder_layer_impl.8} parent=15 // pred_check
        %p159 = pneg %p30
      $region18: #{_encoder_layer_impl.8} parent=15 // pred_check_branch
        %161 = sbr.rel (%p159) target = $region20
      $region19: #{_encoder_layer_impl.8} parent=15 // pred_region
        %p162 = scmp.lt.s32.totalorder %s10, 1
        %s163 = scalar_select %p162, %s10, 1
        %s164 = smul.addr %s163, 4
        %s165 = smul.addr %s164, 8
        %s166 = scalar_lea.vmem %s0, %s165
      $region20: #{_encoder_layer_impl.8} parent=15 // pred_fallthru
        _
      // Predicated region
      $region21: #{_encoder_layer_impl.8} parent=15 // pred_check
        %p167 = pneg %p56
      $region22: #{_encoder_layer_impl.8} parent=15 // pred_check_branch
        %169 = sbr.rel (%p167) target = $region24
      $region23: #{_encoder_layer_impl.8} parent=15 // pred_region
        %p170 = scmp.lt.s32.totalorder %s10, 1
        %s171 = scalar_select %p170, %s10, 1
        %s172 = smul.addr %s171, 4
        %s173 = smul.addr %s172, 8
        %s174 = scalar_lea.vmem %s1, %s173
      $region24: #{_encoder_layer_impl.8} parent=15 // pred_fallthru
        _
      // Predicated region
      $region25: #{_encoder_layer_impl.8} parent=15 // pred_check
        %p175 = pneg %p82
      $region26: #{_encoder_layer_impl.8} parent=15 // pred_check_branch
        %177 = sbr.rel (%p175) target = $region28
      $region27: #{_encoder_layer_impl.8} parent=15 // pred_region
        %p178 = scmp.lt.s32.totalorder %s10, 1
        %s179 = scalar_select %p178, %s10, 1
        %s180 = smul.addr %s179, 4
        %s181 = smul.addr %s180, 8
        %s182 = scalar_lea.vmem %s2, %s181
      $region28: #{_encoder_layer_impl.8} parent=15 // pred_fallthru
        _
      // Predicated region
      $region29: #{_encoder_layer_impl.8} parent=15 // pred_check
        %p183 = pneg %p108
      $region30: #{_encoder_layer_impl.8} parent=15 // pred_check_branch
        %185 = sbr.rel (%p183) target = $region32
      $region31: #{_encoder_layer_impl.8} parent=15 // pred_region
        %p186 = scmp.lt.s32.totalorder %s10, 1
        %s187 = scalar_select %p186, %s10, 1
        %s188 = scalar_lea.vmem %s3, %s187
      $region32: #{_encoder_layer_impl.8} parent=15 // pred_fallthru
        _
    $region16: #{_encoder_layer_impl.8} parent=5 // pred_fallthru
      _
    %p189 = scmp.le.s32.totalorder 1, %s10
    %p190 = scmp.lt.s32.totalorder %s10, 3
    %p191 = pnand %p189, %p190
    %p192 = pneg %p191
    // Predicated region
    $region33: #{_encoder_layer_impl.8} parent=5 // pred_check
      _
    $region34: #{_encoder_layer_impl.8} parent=5 // pred_check_branch
      %194 = sbr.rel (%p191) target = $region36
    $region35: #{_encoder_layer_impl.8} parent=5 // pred_region
      %s195 = ssub.s32 %s10, 1
      %p196 = scmp.lt.s32.totalorder %s15, 1
      %s197 = scalar_select %p196, %s15, 1
      %s198 = smul.addr %s197, 4
      %s199 = smul.addr %s198, 8
      %s200 = scalar_lea.vmem %s0, %s199
      %p201 = pneg %p36
      %p202 = pneg %p33
      %p203 = scmp.lt.s32.totalorder %s15, 1
      %s204 = scalar_select %p203, %s15, 1
      %s205 = smul.addr %s204, 4
      %s206 = smul.addr %s205, 8
      %s207 = scalar_lea.vmem %s1, %s206
      %p208 = pneg %p62
      %p209 = pneg %p59
      %p210 = scmp.lt.s32.totalorder %s15, 1
      %s211 = scalar_select %p210, %s15, 1
      %s212 = smul.addr %s211, 4
      %s213 = smul.addr %s212, 8
      %s214 = scalar_lea.vmem %s2, %s213
      %p215 = pneg %p88
      %p216 = pneg %p85
      %p217 = scmp.lt.s32.totalorder %s15, 1
      %s218 = scalar_select %p217, %s15, 1
      %s219 = scalar_lea.vmem %s3, %s218
      %p220 = pneg %p114
      %p221 = pneg %p111
      %p222 = pneg %p140
      %p223 = pneg %p137
      %p224 = scmp.lt.s32.totalorder %s15, 1
      %s225 = scalar_select %p224, %s15, 1
      %s226 = smul.addr %s225, 4
      %s227 = smul.addr %s226, 8
      %s228 = scalar_lea.vmem %s4, %s227
      %p229 = scmp.lt.s32.totalorder %s15, 1
      %s230 = scalar_select %p229, %s15, 1
      %s231 = smul.addr %s230, 4
      %s232 = smul.addr %s231, 8
      %s233 = scalar_lea.vmem %s0, %s232
      %p234 = scmp.lt.s32.totalorder %s15, 1
      %s235 = scalar_select %p234, %s15, 1
      %s236 = smul.addr %s235, 4
      %s237 = smul.addr %s236, 8
      %s238 = scalar_lea.vmem %s1, %s237
      %p239 = scmp.lt.s32.totalorder %s15, 1
      %s240 = scalar_select %p239, %s15, 1
      %s241 = smul.addr %s240, 4
      %s242 = smul.addr %s241, 8
      %s243 = scalar_lea.vmem %s2, %s242
      %p244 = scmp.lt.s32.totalorder %s15, 1
      %s245 = scalar_select %p244, %s15, 1
      %s246 = scalar_lea.vmem %s3, %s245
      %p247 = scmp.lt.s32.totalorder %s15, 1
      %s248 = scalar_select %p247, %s15, 1
      %s249 = smul.addr %s248, 4
      %s250 = smul.addr %s249, 8
      %s251 = scalar_lea.vmem %s4, %s250
      %v253 = vld [vmem:[%s233] sm:$0xff]
      %v254 = vld [vmem:[%s233 + $0x8] sm:$0xff]
      %v255 = vld [vmem:[%s233 + $0x10] sm:$0xff]
      %v256 = vld [vmem:[%s233 + $0x18] sm:$0xff]
      %v257 = vpack.c.bf16 %v253, %v253
      %v258 = vpack.c.bf16 %v254, %v254
      %v259 = vpack.c.bf16 %v255, %v255
      %v260 = vpack.c.bf16 %v256, %v256
      %v261 = vld [vmem:[%s238] sm:$0xff]
      %v262 = vld [vmem:[%s238 + $0x8] sm:$0xff]
      %v263 = vld [vmem:[%s238 + $0x10] sm:$0xff]
      %v264 = vld [vmem:[%s238 + $0x18] sm:$0xff]
      %v265 = vpack.c.bf16 %v261, %v261
      %v266 = vpack.c.bf16 %v262, %v262
      %v267 = vpack.c.bf16 %v263, %v263
      %v268 = vpack.c.bf16 %v264, %v264
      %v269 = vld [vmem:[%s243] sm:$0xff]
      %v270 = vld [vmem:[%s243 + $0x8] sm:$0xff]
      %v271 = vld [vmem:[%s243 + $0x10] sm:$0xff]
      %v272 = vld [vmem:[%s243 + $0x18] sm:$0xff]
      %v273 = vpack.c.bf16 %v269, %v269
      %v274 = vpack.c.bf16 %v270, %v270
      %v275 = vpack.c.bf16 %v271, %v271
      %v276 = vpack.c.bf16 %v272, %v272
      %vm277 = vcmask 64512
      %v279 = vsel %vm277, %v257, 0
      %v282 = vsel %vm277, %v265, 0
      %284 = vmatprep.subr.bf16.mxu0 0
      %285 = vmatpush1.bf16.xpose.msra.mxu0 0
      %286 = vmatprep.subr.bf16.mxu0 0
      %287 = vmatpush1.bf16.xpose.msra.mxu0 0
      %288 = vmatprep.subr.bf16.mxu0 0
      %289 = vmatpush1.bf16.xpose.msra.mxu0 0
      %290 = vmatprep.subr.bf16.mxu0 0
      %291 = vmatpush1.bf16.xpose.msra.mxu0 0
      %292 = vmatprep.subr.bf16.mxu0 0
      %293 = vmatpush1.bf16.xpose.msra.mxu0 0
      %294 = vmatprep.subr.bf16.mxu0 0
      %295 = vmatpush1.bf16.xpose.msra.mxu0 0
      %296 = vmatprep.subr.bf16.mxu0 0
      %297 = vmatpush1.bf16.xpose.msra.mxu0 0
      %298 = vmatprep.subr.bf16.mxu0 0
      %299 = vmatpush1.bf16.xpose.msra.mxu0 %v282
      %300 = vmatprep.subr.bf16.mxu0 0
      %301 = vmatpush2.bf16.xpose.msra.mxu0 0
      %302 = vmatprep.subr.bf16.mxu0 0
      %303 = vmatpush2.bf16.xpose.msra.mxu0 0
      %304 = vmatprep.subr.bf16.mxu0 0
      %305 = vmatpush2.bf16.xpose.msra.mxu0 0
      %306 = vmatprep.subr.bf16.mxu0 0
      %307 = vmatpush2.bf16.xpose.msra.mxu0 0
      %308 = vmatprep.subr.bf16.mxu0 0
      %309 = vmatpush2.bf16.xpose.msra.mxu0 0
      %310 = vmatprep.subr.bf16.mxu0 0
      %311 = vmatpush2.bf16.xpose.msra.mxu0 0
      %312 = vmatprep.subr.bf16.mxu0 0
      %313 = vmatpush2.bf16.xpose.msra.mxu0 0
      %314 = vmatprep.subr.bf16.mxu0 0
      %315 = vmatpush2.bf16.xpose.msra.mxu0 0
      %316 = vmatprep.mubr.bf16.mxu0 0
      %317 = vmatmul.mubr.bf16.gmra.mxu0 %v279
      %v318 = vpop.f32.mrf.mxu0
      %v319 = vadd.f32 0.0, %v318
      %v320 = vpop.f32.mrf.mxu0
      %v321 = vpop.f32.mrf.mxu0
      %v322 = vpop.f32.mrf.mxu0
      %323 = vdwg.mxu0
      %v325 = vsel %vm277, %v258, 0
      %v328 = vsel %vm277, %v266, 0
      %330 = vmatprep.subr.bf16.mxu0 0
      %331 = vmatpush1.bf16.xpose.msra.mxu0 0
      %332 = vmatprep.subr.bf16.mxu0 0
      %333 = vmatpush1.bf16.xpose.msra.mxu0 0
      %334 = vmatprep.subr.bf16.mxu0 0
      %335 = vmatpush1.bf16.xpose.msra.mxu0 0
      %336 = vmatprep.subr.bf16.mxu0 0
      %337 = vmatpush1.bf16.xpose.msra.mxu0 0
      %338 = vmatprep.subr.bf16.mxu0 0
      %339 = vmatpush1.bf16.xpose.msra.mxu0 0
      %340 = vmatprep.subr.bf16.mxu0 0
      %341 = vmatpush1.bf16.xpose.msra.mxu0 0
      %342 = vmatprep.subr.bf16.mxu0 0
      %343 = vmatpush1.bf16.xpose.msra.mxu0 0
      %344 = vmatprep.subr.bf16.mxu0 0
      %345 = vmatpush1.bf16.xpose.msra.mxu0 %v328
      %346 = vmatprep.subr.bf16.mxu0 0
      %347 = vmatpush2.bf16.xpose.msra.mxu0 0
      %348 = vmatprep.subr.bf16.mxu0 0
      %349 = vmatpush2.bf16.xpose.msra.mxu0 0
      %350 = vmatprep.subr.bf16.mxu0 0
      %351 = vmatpush2.bf16.xpose.msra.mxu0 0
      %352 = vmatprep.subr.bf16.mxu0 0
      %353 = vmatpush2.bf16.xpose.msra.mxu0 0
      %354 = vmatprep.subr.bf16.mxu0 0
      %355 = vmatpush2.bf16.xpose.msra.mxu0 0
      %356 = vmatprep.subr.bf16.mxu0 0
      %357 = vmatpush2.bf16.xpose.msra.mxu0 0
      %358 = vmatprep.subr.bf16.mxu0 0
      %359 = vmatpush2.bf16.xpose.msra.mxu0 0
      %360 = vmatprep.subr.bf16.mxu0 0
      %361 = vmatpush2.bf16.xpose.msra.mxu0 0
      %362 = vmatprep.mubr.bf16.mxu0 0
      %363 = vmatmul.mubr.bf16.gmra.mxu0 %v325
      %v364 = vpop.f32.mrf.mxu0
      %v365 = vadd.f32 0.0, %v364
      %v366 = vpop.f32.mrf.mxu0
      %v367 = vpop.f32.mrf.mxu0
      %v368 = vpop.f32.mrf.mxu0
      %369 = vdwg.mxu0
      %v371 = vsel %vm277, %v259, 0
      %v374 = vsel %vm277, %v267, 0
      %376 = vmatprep.subr.bf16.mxu0 0
      %377 = vmatpush1.bf16.xpose.msra.mxu0 0
      %378 = vmatprep.subr.bf16.mxu0 0
      %379 = vmatpush1.bf16.xpose.msra.mxu0 0
      %380 = vmatprep.subr.bf16.mxu0 0
      %381 = vmatpush1.bf16.xpose.msra.mxu0 0
      %382 = vmatprep.subr.bf16.mxu0 0
      %383 = vmatpush1.bf16.xpose.msra.mxu0 0
      %384 = vmatprep.subr.bf16.mxu0 0
      %385 = vmatpush1.bf16.xpose.msra.mxu0 0
      %386 = vmatprep.subr.bf16.mxu0 0
      %387 = vmatpush1.bf16.xpose.msra.mxu0 0
      %388 = vmatprep.subr.bf16.mxu0 0
      %389 = vmatpush1.bf16.xpose.msra.mxu0 0
      %390 = vmatprep.subr.bf16.mxu0 0
      %391 = vmatpush1.bf16.xpose.msra.mxu0 %v374
      %392 = vmatprep.subr.bf16.mxu0 0
      %393 = vmatpush2.bf16.xpose.msra.mxu0 0
      %394 = vmatprep.subr.bf16.mxu0 0
      %395 = vmatpush2.bf16.xpose.msra.mxu0 0
      %396 = vmatprep.subr.bf16.mxu0 0
      %397 = vmatpush2.bf16.xpose.msra.mxu0 0
      %398 = vmatprep.subr.bf16.mxu0 0
      %399 = vmatpush2.bf16.xpose.msra.mxu0 0
      %400 = vmatprep.subr.bf16.mxu0 0
      %401 = vmatpush2.bf16.xpose.msra.mxu0 0
      %402 = vmatprep.subr.bf16.mxu0 0
      %403 = vmatpush2.bf16.xpose.msra.mxu0 0
      %404 = vmatprep.subr.bf16.mxu0 0
      %405 = vmatpush2.bf16.xpose.msra.mxu0 0
      %406 = vmatprep.subr.bf16.mxu0 0
      %407 = vmatpush2.bf16.xpose.msra.mxu0 0
      %408 = vmatprep.mubr.bf16.mxu0 0
      %409 = vmatmul.mubr.bf16.gmra.mxu0 %v371
      %v410 = vpop.f32.mrf.mxu0
      %v411 = vadd.f32 0.0, %v410
      %v412 = vpop.f32.mrf.mxu0
      %v413 = vpop.f32.mrf.mxu0
      %v414 = vpop.f32.mrf.mxu0
      %415 = vdwg.mxu0
      %v417 = vsel %vm277, %v260, 0
      %v420 = vsel %vm277, %v268, 0
      %422 = vmatprep.subr.bf16.mxu0 0
      %423 = vmatpush1.bf16.xpose.msra.mxu0 0
      %424 = vmatprep.subr.bf16.mxu0 0
      %425 = vmatpush1.bf16.xpose.msra.mxu0 0
      %426 = vmatprep.subr.bf16.mxu0 0
      %427 = vmatpush1.bf16.xpose.msra.mxu0 0
      %428 = vmatprep.subr.bf16.mxu0 0
      %429 = vmatpush1.bf16.xpose.msra.mxu0 0
      %430 = vmatprep.subr.bf16.mxu0 0
      %431 = vmatpush1.bf16.xpose.msra.mxu0 0
      %432 = vmatprep.subr.bf16.mxu0 0
      %433 = vmatpush1.bf16.xpose.msra.mxu0 0
      %434 = vmatprep.subr.bf16.mxu0 0
      %435 = vmatpush1.bf16.xpose.msra.mxu0 0
      %436 = vmatprep.subr.bf16.mxu0 0
      %437 = vmatpush1.bf16.xpose.msra.mxu0 %v420
      %438 = vmatprep.subr.bf16.mxu0 0
      %439 = vmatpush2.bf16.xpose.msra.mxu0 0
      %440 = vmatprep.subr.bf16.mxu0 0
      %441 = vmatpush2.bf16.xpose.msra.mxu0 0
      %442 = vmatprep.subr.bf16.mxu0 0
      %443 = vmatpush2.bf16.xpose.msra.mxu0 0
      %444 = vmatprep.subr.bf16.mxu0 0
      %445 = vmatpush2.bf16.xpose.msra.mxu0 0
      %446 = vmatprep.subr.bf16.mxu0 0
      %447 = vmatpush2.bf16.xpose.msra.mxu0 0
      %448 = vmatprep.subr.bf16.mxu0 0
      %449 = vmatpush2.bf16.xpose.msra.mxu0 0
      %450 = vmatprep.subr.bf16.mxu0 0
      %451 = vmatpush2.bf16.xpose.msra.mxu0 0
      %452 = vmatprep.subr.bf16.mxu0 0
      %453 = vmatpush2.bf16.xpose.msra.mxu0 0
      %454 = vmatprep.mubr.bf16.mxu0 0
      %455 = vmatmul.mubr.bf16.gmra.mxu0 %v417
      %v456 = vpop.f32.mrf.mxu0
      %v457 = vadd.f32 0.0, %v456
      %v458 = vpop.f32.mrf.mxu0
      %v459 = vpop.f32.mrf.mxu0
      %v460 = vpop.f32.mrf.mxu0
      %461 = vdwg.mxu0
      %v462 = vmul.f32 %v319, 0.35355338
      %v463 = vmul.f32 %v365, 0.35355338
      %v464 = vmul.f32 %v411, 0.35355338
      %v465 = vmul.f32 %v457, 0.35355338
      %v466 = vld [vmem:[%s246] sm:$0x1]
      %vm467 = vcmp.eq.f32.partialorder %v466, 0.0
      %v468 = vsel %vm467, 1, 0
      %v469 = vlaneseq
      %v470 = vshrl.u32 %v469, 7
      %v471 = vsub.s32 0, %v470
      %v472 = vrot.slane %v468, %v471
      %vm473 = vcmp.eq.s32.totalorder %v472, 1
      %v474 = vsel %vm473, -1e+09, %v462
      %v475 = vsel %vm473, -1e+09, %v463
      %v476 = vsel %vm473, -1e+09, %v464
      %v477 = vsel %vm473, -1e+09, %v465
      %v478 = vsel %vm277, %v474, -inf
      %479 = vmax.xlane.f32.xlu0 %v478
      %v480 = vpop.xlane.xlu0 %479
      %v481 = vsel %vm277, %v475, -inf
      %482 = vmax.xlane.f32.xlu0 %v481
      %v483 = vpop.xlane.xlu0 %482
      %v484 = vsel %vm277, %v476, -inf
      %485 = vmax.xlane.f32.xlu0 %v484
      %v486 = vpop.xlane.xlu0 %485
      %v487 = vsel %vm277, %v477, -inf
      %488 = vmax.xlane.f32.xlu0 %v487
      %v489 = vpop.xlane.xlu0 %488
      %v490 = vsub.f32 %v474, %v480
      %v491 = vsub.f32 %v475, %v483
      %v492 = vsub.f32 %v476, %v486
      %v493 = vsub.f32 %v477, %v489
      %v494 = vmul.f32 %v490, 1.442695
      %v495 = vpow.pop %v494
      %v496 = vmul.f32 %v491, 1.442695
      %v497 = vpow.pop %v496
      %v498 = vmul.f32 %v492, 1.442695
      %v499 = vpow.pop %v498
      %v500 = vmul.f32 %v493, 1.442695
      %v501 = vpow.pop %v500
      %v502 = vsel %vm277, %v495, 0.0
      %503 = vadd.xlane.f32.xlu0 %v502
      %v504 = vpop.xlane.xlu0 %503
      %v505 = vsel %vm277, %v497, 0.0
      %506 = vadd.xlane.f32.xlu0 %v505
      %v507 = vpop.xlane.xlu0 %506
      %v508 = vsel %vm277, %v499, 0.0
      %509 = vadd.xlane.f32.xlu0 %v508
      %v510 = vpop.xlane.xlu0 %509
      %v511 = vsel %vm277, %v501, 0.0
      %512 = vadd.xlane.f32.xlu0 %v511
      %v513 = vpop.xlane.xlu0 %512
      %v514 = vrcp.pop %v504
      %v515 = vmul.f32 %v495, %v514
      %v516 = vrcp.pop %v507
      %v517 = vmul.f32 %v497, %v516
      %v518 = vrcp.pop %v510
      %v519 = vmul.f32 %v499, %v518
      %v520 = vrcp.pop %v513
      %v521 = vmul.f32 %v501, %v520
      %v522 = vpack.c.bf16 %v515, %v515
      %v523 = vpack.c.bf16 %v517, %v517
      %v524 = vpack.c.bf16 %v519, %v519
      %v525 = vpack.c.bf16 %v521, %v521
      %v527 = vsel %vm277, %v522, 0
      %vm529 = vcmask 1043456
      %v531 = vsel %vm529, %v273, 0
      %533 = vmatprep.subr.bf16.mxu0 0
      %534 = vmatpush1.bf16.msra.mxu0 0
      %535 = vmatprep.subr.bf16.mxu0 0
      %536 = vmatpush1.bf16.msra.mxu0 0
      %537 = vmatprep.subr.bf16.mxu0 0
      %538 = vmatpush1.bf16.msra.mxu0 0
      %539 = vmatprep.subr.bf16.mxu0 0
      %540 = vmatpush1.bf16.msra.mxu0 0
      %541 = vmatprep.subr.bf16.mxu0 0
      %542 = vmatpush1.bf16.msra.mxu0 0
      %543 = vmatprep.subr.bf16.mxu0 0
      %544 = vmatpush1.bf16.msra.mxu0 0
      %545 = vmatprep.subr.bf16.mxu0 0
      %546 = vmatpush1.bf16.msra.mxu0 0
      %547 = vmatprep.subr.bf16.mxu0 0
      %548 = vmatpush1.bf16.msra.mxu0 %v531
      %549 = vmatprep.subr.bf16.mxu0 0
      %550 = vmatpush2.bf16.msra.mxu0 0
      %551 = vmatprep.subr.bf16.mxu0 0
      %552 = vmatpush2.bf16.msra.mxu0 0
      %553 = vmatprep.subr.bf16.mxu0 0
      %554 = vmatpush2.bf16.msra.mxu0 0
      %555 = vmatprep.subr.bf16.mxu0 0
      %556 = vmatpush2.bf16.msra.mxu0 0
      %557 = vmatprep.subr.bf16.mxu0 0
      %558 = vmatpush2.bf16.msra.mxu0 0
      %559 = vmatprep.subr.bf16.mxu0 0
      %560 = vmatpush2.bf16.msra.mxu0 0
      %561 = vmatprep.subr.bf16.mxu0 0
      %562 = vmatpush2.bf16.msra.mxu0 0
      %563 = vmatprep.subr.bf16.mxu0 0
      %564 = vmatpush2.bf16.msra.mxu0 0
      %565 = vmatprep.mubr.bf16.mxu0 0
      %566 = vmatmul.mubr.bf16.gmra.mxu0 %v527
      %v567 = vpop.f32.mrf.mxu0
      %v568 = vadd.f32 0.0, %v567
      %v569 = vpop.f32.mrf.mxu0
      %v570 = vpop.f32.mrf.mxu0
      %v571 = vpop.f32.mrf.mxu0
      %572 = vdwg.mxu0
      %v574 = vsel %vm277, %v523, 0
      %v577 = vsel %vm529, %v274, 0
      %579 = vmatprep.subr.bf16.mxu0 0
      %580 = vmatpush1.bf16.msra.mxu0 0
      %581 = vmatprep.subr.bf16.mxu0 0
      %582 = vmatpush1.bf16.msra.mxu0 0
      %583 = vmatprep.subr.bf16.mxu0 0
      %584 = vmatpush1.bf16.msra.mxu0 0
      %585 = vmatprep.subr.bf16.mxu0 0
      %586 = vmatpush1.bf16.msra.mxu0 0
      %587 = vmatprep.subr.bf16.mxu0 0
      %588 = vmatpush1.bf16.msra.mxu0 0
      %589 = vmatprep.subr.bf16.mxu0 0
      %590 = vmatpush1.bf16.msra.mxu0 0
      %591 = vmatprep.subr.bf16.mxu0 0
      %592 = vmatpush1.bf16.msra.mxu0 0
      %593 = vmatprep.subr.bf16.mxu0 0
      %594 = vmatpush1.bf16.msra.mxu0 %v577
      %595 = vmatprep.subr.bf16.mxu0 0
      %596 = vmatpush2.bf16.msra.mxu0 0
      %597 = vmatprep.subr.bf16.mxu0 0
      %598 = vmatpush2.bf16.msra.mxu0 0
      %599 = vmatprep.subr.bf16.mxu0 0
      %600 = vmatpush2.bf16.msra.mxu0 0
      %601 = vmatprep.subr.bf16.mxu0 0
      %602 = vmatpush2.bf16.msra.mxu0 0
      %603 = vmatprep.subr.bf16.mxu0 0
      %604 = vmatpush2.bf16.msra.mxu0 0
      %605 = vmatprep.subr.bf16.mxu0 0
      %606 = vmatpush2.bf16.msra.mxu0 0
      %607 = vmatprep.subr.bf16.mxu0 0
      %608 = vmatpush2.bf16.msra.mxu0 0
      %609 = vmatprep.subr.bf16.mxu0 0
      %610 = vmatpush2.bf16.msra.mxu0 0
      %611 = vmatprep.mubr.bf16.mxu0 0
      %612 = vmatmul.mubr.bf16.gmra.mxu0 %v574
      %v613 = vpop.f32.mrf.mxu0
      %v614 = vadd.f32 0.0, %v613
      %v615 = vpop.f32.mrf.mxu0
      %v616 = vpop.f32.mrf.mxu0
      %v617 = vpop.f32.mrf.mxu0
      %618 = vdwg.mxu0
      %v620 = vsel %vm277, %v524, 0
      %v623 = vsel %vm529, %v275, 0
      %625 = vmatprep.subr.bf16.mxu0 0
      %626 = vmatpush1.bf16.msra.mxu0 0
      %627 = vmatprep.subr.bf16.mxu0 0
      %628 = vmatpush1.bf16.msra.mxu0 0
      %629 = vmatprep.subr.bf16.mxu0 0
      %630 = vmatpush1.bf16.msra.mxu0 0
      %631 = vmatprep.subr.bf16.mxu0 0
      %632 = vmatpush1.bf16.msra.mxu0 0
      %633 = vmatprep.subr.bf16.mxu0 0
      %634 = vmatpush1.bf16.msra.mxu0 0
      %635 = vmatprep.subr.bf16.mxu0 0
      %636 = vmatpush1.bf16.msra.mxu0 0
      %637 = vmatprep.subr.bf16.mxu0 0
      %638 = vmatpush1.bf16.msra.mxu0 0
      %639 = vmatprep.subr.bf16.mxu0 0
      %640 = vmatpush1.bf16.msra.mxu0 %v623
      %641 = vmatprep.subr.bf16.mxu0 0
      %642 = vmatpush2.bf16.msra.mxu0 0
      %643 = vmatprep.subr.bf16.mxu0 0
      %644 = vmatpush2.bf16.msra.mxu0 0
      %645 = vmatprep.subr.bf16.mxu0 0
      %646 = vmatpush2.bf16.msra.mxu0 0
      %647 = vmatprep.subr.bf16.mxu0 0
      %648 = vmatpush2.bf16.msra.mxu0 0
      %649 = vmatprep.subr.bf16.mxu0 0
      %650 = vmatpush2.bf16.msra.mxu0 0
      %651 = vmatprep.subr.bf16.mxu0 0
      %652 = vmatpush2.bf16.msra.mxu0 0
      %653 = vmatprep.subr.bf16.mxu0 0
      %654 = vmatpush2.bf16.msra.mxu0 0
      %655 = vmatprep.subr.bf16.mxu0 0
      %656 = vmatpush2.bf16.msra.mxu0 0
      %657 = vmatprep.mubr.bf16.mxu0 0
      %658 = vmatmul.mubr.bf16.gmra.mxu0 %v620
      %v659 = vpop.f32.mrf.mxu0
      %v660 = vadd.f32 0.0, %v659
      %v661 = vpop.f32.mrf.mxu0
      %v662 = vpop.f32.mrf.mxu0
      %v663 = vpop.f32.mrf.mxu0
      %664 = vdwg.mxu0
      %v666 = vsel %vm277, %v525, 0
      %v669 = vsel %vm529, %v276, 0
      %671 = vmatprep.subr.bf16.mxu0 0
      %672 = vmatpush1.bf16.msra.mxu0 0
      %673 = vmatprep.subr.bf16.mxu0 0
      %674 = vmatpush1.bf16.msra.mxu0 0
      %675 = vmatprep.subr.bf16.mxu0 0
      %676 = vmatpush1.bf16.msra.mxu0 0
      %677 = vmatprep.subr.bf16.mxu0 0
      %678 = vmatpush1.bf16.msra.mxu0 0
      %679 = vmatprep.subr.bf16.mxu0 0
      %680 = vmatpush1.bf16.msra.mxu0 0
      %681 = vmatprep.subr.bf16.mxu0 0
      %682 = vmatpush1.bf16.msra.mxu0 0
      %683 = vmatprep.subr.bf16.mxu0 0
      %684 = vmatpush1.bf16.msra.mxu0 0
      %685 = vmatprep.subr.bf16.mxu0 0
      %686 = vmatpush1.bf16.msra.mxu0 %v669
      %687 = vmatprep.subr.bf16.mxu0 0
      %688 = vmatpush2.bf16.msra.mxu0 0
      %689 = vmatprep.subr.bf16.mxu0 0
      %690 = vmatpush2.bf16.msra.mxu0 0
      %691 = vmatprep.subr.bf16.mxu0 0
      %692 = vmatpush2.bf16.msra.mxu0 0
      %693 = vmatprep.subr.bf16.mxu0 0
      %694 = vmatpush2.bf16.msra.mxu0 0
      %695 = vmatprep.subr.bf16.mxu0 0
      %696 = vmatpush2.bf16.msra.mxu0 0
      %697 = vmatprep.subr.bf16.mxu0 0
      %698 = vmatpush2.bf16.msra.mxu0 0
      %699 = vmatprep.subr.bf16.mxu0 0
      %700 = vmatpush2.bf16.msra.mxu0 0
      %701 = vmatprep.subr.bf16.mxu0 0
      %702 = vmatpush2.bf16.msra.mxu0 0
      %703 = vmatprep.mubr.bf16.mxu0 0
      %704 = vmatmul.mubr.bf16.gmra.mxu0 %v666
      %v705 = vpop.f32.mrf.mxu0
      %v706 = vadd.f32 0.0, %v705
      %v707 = vpop.f32.mrf.mxu0
      %v708 = vpop.f32.mrf.mxu0
      %v709 = vpop.f32.mrf.mxu0
      %710 = vdwg.mxu0
      %711 = vst.msk [vmem:[%s251] sm:$0xff] %vm277, %v568
      %712 = vst.msk [vmem:[%s251 + $0x8] sm:$0xff] %vm277, %v614
      %713 = vst.msk [vmem:[%s251 + $0x10] sm:$0xff] %vm277, %v660
      %714 = vst.msk [vmem:[%s251 + $0x18] sm:$0xff] %vm277, %v706
      %p715 = scmp.lt.s32.totalorder %s15, 1
      %s716 = scalar_select %p715, %s15, 1
      %s717 = smul.addr %s716, 4
      %s718 = smul.addr %s717, 8
      %s719 = scalar_lea.vmem %s4, %s718
      // Predicated region
      $region37: #{_encoder_layer_impl.8} parent=35 // pred_check
        %p720 = pneg %p137
      $region38: #{_encoder_layer_impl.8} parent=35 // pred_check_branch
        %722 = sbr.rel (%p720) target = $region40
      $region39: #{_encoder_layer_impl.8} parent=35 // pred_region
        _
      $region40: #{_encoder_layer_impl.8} parent=35 // pred_fallthru
        _
    $region36: #{_encoder_layer_impl.8} parent=5 // pred_fallthru
      _
    %p723 = scmp.le.s32.totalorder 2, %s10
    // Predicated region
    $region41: #{_encoder_layer_impl.8} parent=5 // pred_check
      %p724 = pneg %p723
    $region42: #{_encoder_layer_impl.8} parent=5 // pred_check_branch
      %726 = sbr.rel (%p724) target = $region44
    $region43: #{_encoder_layer_impl.8} parent=5 // pred_region
      %s727 = ssub.s32 %s10, 2
      // Predicated region
      $region45: #{_encoder_layer_impl.8} parent=43 // pred_check
        %p728 = pneg %p143
      $region46: #{_encoder_layer_impl.8} parent=43 // pred_check_branch
        %730 = sbr.rel (%p728) target = $region48
      $region47: #{_encoder_layer_impl.8} parent=43 // pred_region
        %p731 = scmp.lt.s32.totalorder %s16, 1
        %s732 = scalar_select %p731, %s16, 1
        %s733 = smul.addr %s732, 4
        %s734 = smul.addr %s733, 8
        %s735 = scalar_lea.vmem %s4, %s734
      $region48: #{_encoder_layer_impl.8} parent=43 // pred_fallthru
        _
    $region44: #{_encoder_layer_impl.8} parent=5 // pred_fallthru
      _
  $region6: #{_encoder_layer_impl.8} parent=0 // loop_footer
    %s14 = sadd.s32 1, %s10
  $region7: #{_encoder_layer_impl.8} parent=0 // loop_footer_branch
    %9 = sbr.rel target = $region3
  $region8: #{_encoder_layer_impl.8} parent=0 // loop_exit
    _

// kernel: _encoder_layer_impl.9
$region0: #{_encoder_layer_impl.9}
  #allocation0 [shape = 'u32[]', space=smem, size = 0x4, offset = 0x4, fixed_abs, tag = 'smem constant byte address 0x4 - core index']
  #allocation1 [shape = 'u32[144,128]{1,0:T(1,128)}', space=vmem, size = 0x12000, scoped, tag = 'internal scratch']
  %s0 = inlined_call_operand.vmem [shape: f32[16,32], index: 0, kind: input, shape index: {}]
  %s1 = inlined_call_operand.vmem [shape: bf16[32,32], index: 1, kind: input, shape index: {}]
  %s2 = inlined_call_operand.vmem [shape: f32[1,32], index: 2, kind: input, shape index: {}]
  %s3 = inlined_call_operand.vmem [shape: f32[16,32], index: 3, kind: output, shape index: {}]
  %s4 = sld [smem:[#allocation0]]
  $region22: #{_encoder_layer_impl.9} parent=0
    _
  %s6 = ssub.s32 1, %s4
  %s7 = scalar_select 0, %s6, %s4
  // Predicated region
  $region2: #{_encoder_layer_impl.9} parent=0 // pred_check
    _
  $region3: #{_encoder_layer_impl.9} parent=0 // pred_check_branch
    %9 = sbr.rel (0) target = $region5
  $region4: #{_encoder_layer_impl.9} parent=0 // pred_region
    _
  $region5: #{_encoder_layer_impl.9} parent=0 // pred_fallthru
    _
  // Predicated region
  $region6: #{_encoder_layer_impl.9} parent=0 // pred_check
    _
  $region7: #{_encoder_layer_impl.9} parent=0 // pred_check_branch
    %11 = sbr.rel (0) target = $region9
  $region8: #{_encoder_layer_impl.9} parent=0 // pred_region
    _
  $region9: #{_encoder_layer_impl.9} parent=0 // pred_fallthru
    _
  // Predicated region
  $region10: #{_encoder_layer_impl.9} parent=0 // pred_check
    _
  $region11: #{_encoder_layer_impl.9} parent=0 // pred_check_branch
    %13 = sbr.rel (0) target = $region13
  $region12: #{_encoder_layer_impl.9} parent=0 // pred_region
    _
  $region13: #{_encoder_layer_impl.9} parent=0 // pred_fallthru
    _
  %v15 = vld [vmem:[%s0] sm:$0xff]
  %v16 = vld [vmem:[%s0 + $0x8] sm:$0xff]
  %v17 = vpack.c.bf16 %v16, %v15
  %v18 = vld [vmem:[%s1] sm:$0xf]
  %v19 = vld [vmem:[%s1 + $0x4] sm:$0xf]
  %v20 = vld [vmem:[%s1 + $0x8] sm:$0xf]
  %v21 = vld [vmem:[%s1 + $0xc] sm:$0xf]
  %v22 = vld [vmem:[%s2] sm:$0x1]
  %v24 = vlaneseq
  %v25 = vshrl.u32 %v24, 7
  %v26 = vsub.s32 0, %v25
  %v27 = vrot.slane %v22, %v26
  %v33 = vunpack.c.l.b16 %v18
  %v34 = vunpack.c.l.b16 %v19
  %v35 = vunpack.c.l.b16 %v20
  %v36 = vunpack.c.l.b16 %v21
  %v37 = vpack.c.b16 %v34, %v33
  %v38 = vpack.c.b16 %v36, %v35
  %vm41 = vcmask 261120
  %v43 = vsel %vm41, %v17, 0
  %45 = vmatprep.subr.bf16.mxu0 0
  %46 = vmatpush1.bf16.msra.mxu0 0
  %47 = vmatprep.subr.bf16.mxu0 0
  %48 = vmatpush1.bf16.msra.mxu0 0
  %49 = vmatprep.subr.bf16.mxu0 0
  %50 = vmatpush1.bf16.msra.mxu0 0
  %51 = vmatprep.subr.bf16.mxu0 0
  %52 = vmatpush1.bf16.msra.mxu0 0
  %53 = vmatprep.subr.bf16.mxu0 0
  %54 = vmatpush1.bf16.msra.mxu0 0
  %55 = vmatprep.subr.bf16.mxu0 0
  %56 = vmatpush1.bf16.msra.mxu0 0
  %57 = vmatprep.subr.bf16.mxu0 0
  %58 = vmatpush1.bf16.msra.mxu0 %v38
  %59 = vmatprep.subr.bf16.mxu0 0
  %60 = vmatpush1.bf16.msra.mxu0 %v37
  %61 = vmatprep.subr.bf16.mxu0 0
  %62 = vmatpush2.bf16.msra.mxu0 0
  %63 = vmatprep.subr.bf16.mxu0 0
  %64 = vmatpush2.bf16.msra.mxu0 0
  %65 = vmatprep.subr.bf16.mxu0 0
  %66 = vmatpush2.bf16.msra.mxu0 0
  %67 = vmatprep.subr.bf16.mxu0 0
  %68 = vmatpush2.bf16.msra.mxu0 0
  %69 = vmatprep.subr.bf16.mxu0 0
  %70 = vmatpush2.bf16.msra.mxu0 0
  %71 = vmatprep.subr.bf16.mxu0 0
  %72 = vmatpush2.bf16.msra.mxu0 0
  %73 = vmatprep.subr.bf16.mxu0 0
  %74 = vmatpush2.bf16.msra.mxu0 0
  %75 = vmatprep.subr.bf16.mxu0 0
  %76 = vmatpush2.bf16.msra.mxu0 0
  %77 = vmatprep.mubr.bf16.mxu0 0
  %78 = vmatmul.mubr.bf16.gmra.mxu0 %v43
  %v79 = vpop.f32.mrf.mxu0
  %v80 = vadd.f32 %v27, %v79
  %v81 = vpop.f32.mrf.mxu0
  %v82 = vpop.f32.mrf.mxu0
  %v83 = vadd.f32 %v27, %v82
  %v84 = vpop.f32.mrf.mxu0
  %85 = vdwg.mxu0
  %86 = vst.msk [vmem:[%s3] sm:$0xff] %vm41, %v80
  %87 = vst.msk [vmem:[%s3 + $0x8] sm:$0xff] %vm41, %v83
  // Predicated region
  $region14: #{_encoder_layer_impl.9} parent=0 // pred_check
    _
  $region15: #{_encoder_layer_impl.9} parent=0 // pred_check_branch
    %89 = sbr.rel (0) target = $region17
  $region16: #{_encoder_layer_impl.9} parent=0 // pred_region
    _
  $region17: #{_encoder_layer_impl.9} parent=0 // pred_fallthru
    _
  // Predicated region
  $region18: #{_encoder_layer_impl.9} parent=0 // pred_check
    _
  $region19: #{_encoder_layer_impl.9} parent=0 // pred_check_branch
    %91 = sbr.rel (0) target = $region21
  $region20: #{_encoder_layer_impl.9} parent=0 // pred_region
    _
  $region21: #{_encoder_layer_impl.9} parent=0 // pred_fallthru
    _

// kernel: _encoder_layer_impl.11
$region0: #{_encoder_layer_impl.11}
  #allocation0 [shape = 'u32[]', space=smem, size = 0x4, offset = 0x4, fixed_abs, tag = 'smem constant byte address 0x4 - core index']
  #allocation1 [shape = 'u32[144,128]{1,0:T(1,128)}', space=vmem, size = 0x12000, scoped, tag = 'internal scratch']
  #allocation2 [shape = 'f32[16,32]{1,0:T(8,128)}', space=vmem, size = 0x2000, scoped, tag = 'scratch operand']
  %s0 = inlined_call_operand.vmem [shape: f32[16,32], index: 0, kind: input, shape index: {}]
  %s1 = inlined_call_operand.vmem [shape: bf16[32,64], index: 1, kind: input, shape index: {}]
  %s2 = inlined_call_operand.vmem [shape: f32[1,64], index: 2, kind: input, shape index: {}]
  %s3 = inlined_call_operand.vmem [shape: bf16[64,32], index: 3, kind: input, shape index: {}]
  %s4 = inlined_call_operand.vmem [shape: f32[1,32], index: 4, kind: input, shape index: {}]
  %s5 = inlined_call_operand.vmem [shape: f32[16,32], index: 5, kind: output, shape index: {}]
  %s6 = sld [smem:[#allocation0]]
  $region38: #{_encoder_layer_impl.11} parent=0
    _
  %s8 = ssub.s32 1, %s6
  %s9 = scalar_select 0, %s8, %s6
  // Predicated region
  $region2: #{_encoder_layer_impl.11} parent=0 // pred_check
    _
  $region3: #{_encoder_layer_impl.11} parent=0 // pred_check_branch
    %11 = sbr.rel (0) target = $region5
  $region4: #{_encoder_layer_impl.11} parent=0 // pred_region
    _
  $region5: #{_encoder_layer_impl.11} parent=0 // pred_fallthru
    _
  // Predicated region
  $region6: #{_encoder_layer_impl.11} parent=0 // pred_check
    _
  $region7: #{_encoder_layer_impl.11} parent=0 // pred_check_branch
    %13 = sbr.rel (0) target = $region9
  $region8: #{_encoder_layer_impl.11} parent=0 // pred_region
    _
  $region9: #{_encoder_layer_impl.11} parent=0 // pred_fallthru
    _
  // Predicated region
  $region10: #{_encoder_layer_impl.11} parent=0 // pred_check
    _
  $region11: #{_encoder_layer_impl.11} parent=0 // pred_check_branch
    %15 = sbr.rel (0) target = $region13
  $region12: #{_encoder_layer_impl.11} parent=0 // pred_region
    _
  $region13: #{_encoder_layer_impl.11} parent=0 // pred_fallthru
    _
  // Predicated region
  $region14: #{_encoder_layer_impl.11} parent=0 // pred_check
    _
  $region15: #{_encoder_layer_impl.11} parent=0 // pred_check_branch
    %17 = sbr.rel (0) target = $region17
  $region16: #{_encoder_layer_impl.11} parent=0 // pred_region
    _
  $region17: #{_encoder_layer_impl.11} parent=0 // pred_fallthru
    _
  // Predicated region
  $region18: #{_encoder_layer_impl.11} parent=0 // pred_check
    _
  $region19: #{_encoder_layer_impl.11} parent=0 // pred_check_branch
    %19 = sbr.rel (0) target = $region21
  $region20: #{_encoder_layer_impl.11} parent=0 // pred_region
    _
  $region21: #{_encoder_layer_impl.11} parent=0 // pred_fallthru
    _
  %p21 = scmp.eq.s32.totalorder 0, 0
  // Predicated region
  $region22: #{_encoder_layer_impl.11} parent=0 // pred_check
    %p22 = pneg %p21
  $region23: #{_encoder_layer_impl.11} parent=0 // pred_check_branch
    %24 = sbr.rel (%p22) target = $region25
  $region24: #{_encoder_layer_impl.11} parent=0 // pred_region
    %vm25 = vcmask 261120
    %26 = vst.msk [vmem:[#allocation2] sm:$0xff] %vm25, 0.0
    %27 = vst.msk [vmem:[#allocation2 + $0x8] sm:$0xff] %vm25, 0.0
  $region25: #{_encoder_layer_impl.11} parent=0 // pred_fallthru
    _
  %v28 = vld [vmem:[%s0] sm:$0xff]
  %v29 = vld [vmem:[%s0 + $0x8] sm:$0xff]
  %v30 = vpack.c.bf16 %v29, %v28
  %v31 = vld [vmem:[%s1] sm:$0xf]
  %v32 = vld [vmem:[%s1 + $0x4] sm:$0xf]
  %v33 = vld [vmem:[%s1 + $0x8] sm:$0xf]
  %v34 = vld [vmem:[%s1 + $0xc] sm:$0xf]
  %v35 = vld [vmem:[%s2] sm:$0x1]
  %v37 = vlaneseq
  %v38 = vshrl.u32 %v37, 7
  %v39 = vsub.s32 0, %v38
  %v40 = vrot.slane %v35, %v39
  %v46 = vunpack.c.l.b16 %v31
  %v47 = vunpack.c.l.b16 %v32
  %v48 = vunpack.c.l.b16 %v33
  %v49 = vunpack.c.l.b16 %v34
  %v50 = vpack.c.b16 %v47, %v46
  %v51 = vpack.c.b16 %v49, %v48
  %vm54 = vcmask 261120
  %v56 = vsel %vm54, %v30, 0
  %58 = vmatprep.subr.bf16.mxu0 0
  %59 = vmatpush1.bf16.msra.mxu0 0
  %60 = vmatprep.subr.bf16.mxu0 0
  %61 = vmatpush1.bf16.msra.mxu0 0
  %62 = vmatprep.subr.bf16.mxu0 0
  %63 = vmatpush1.bf16.msra.mxu0 0
  %64 = vmatprep.subr.bf16.mxu0 0
  %65 = vmatpush1.bf16.msra.mxu0 0
  %66 = vmatprep.subr.bf16.mxu0 0
  %67 = vmatpush1.bf16.msra.mxu0 0
  %68 = vmatprep.subr.bf16.mxu0 0
  %69 = vmatpush1.bf16.msra.mxu0 0
  %70 = vmatprep.subr.bf16.mxu0 0
  %71 = vmatpush1.bf16.msra.mxu0 %v51
  %72 = vmatprep.subr.bf16.mxu0 0
  %73 = vmatpush1.bf16.msra.mxu0 %v50
  %74 = vmatprep.subr.bf16.mxu0 0
  %75 = vmatpush2.bf16.msra.mxu0 0
  %76 = vmatprep.subr.bf16.mxu0 0
  %77 = vmatpush2.bf16.msra.mxu0 0
  %78 = vmatprep.subr.bf16.mxu0 0
  %79 = vmatpush2.bf16.msra.mxu0 0
  %80 = vmatprep.subr.bf16.mxu0 0
  %81 = vmatpush2.bf16.msra.mxu0 0
  %82 = vmatprep.subr.bf16.mxu0 0
  %83 = vmatpush2.bf16.msra.mxu0 0
  %84 = vmatprep.subr.bf16.mxu0 0
  %85 = vmatpush2.bf16.msra.mxu0 0
  %86 = vmatprep.subr.bf16.mxu0 0
  %87 = vmatpush2.bf16.msra.mxu0 0
  %88 = vmatprep.subr.bf16.mxu0 0
  %89 = vmatpush2.bf16.msra.mxu0 0
  %90 = vmatprep.mubr.bf16.mxu0 0
  %91 = vmatmul.mubr.bf16.gmra.mxu0 %v56
  %v92 = vpop.f32.mrf.mxu0
  %v93 = vadd.f32 %v40, %v92
  %v94 = vpop.f32.mrf.mxu0
  %v95 = vpop.f32.mrf.mxu0
  %v96 = vadd.f32 %v40, %v95
  %v97 = vpop.f32.mrf.mxu0
  %98 = vdwg.mxu0
  %v99 = vmax.f32 %v93, 0.0
  %v100 = vmax.f32 %v96, 0.0
  %v101 = vld [vmem:[#allocation2] sm:$0xff]
  %v102 = vld [vmem:[#allocation2 + $0x8] sm:$0xff]
  %v103 = vpack.c.bf16 %v100, %v99
  %v104 = vld [vmem:[%s3] sm:$0xf]
  %v105 = vld [vmem:[%s3 + $0x4] sm:$0xf]
  %v106 = vld [vmem:[%s3 + $0x8] sm:$0xf]
  %v107 = vld [vmem:[%s3 + $0xc] sm:$0xf]
  %v108 = vld [vmem:[%s3 + $0x10] sm:$0xf]
  %v109 = vld [vmem:[%s3 + $0x14] sm:$0xf]
  %v110 = vld [vmem:[%s3 + $0x18] sm:$0xf]
  %v111 = vld [vmem:[%s3 + $0x1c] sm:$0xf]
  %v120 = vunpack.c.l.b16 %v104
  %v121 = vunpack.c.l.b16 %v105
  %v122 = vunpack.c.l.b16 %v106
  %v123 = vunpack.c.l.b16 %v107
  %v124 = vunpack.c.l.b16 %v108
  %v125 = vunpack.c.l.b16 %v109
  %v126 = vunpack.c.l.b16 %v110
  %v127 = vunpack.c.l.b16 %v111
  %v128 = vpack.c.b16 %v121, %v120
  %v129 = vpack.c.b16 %v123, %v122
  %v130 = vpack.c.b16 %v125, %v124
  %v131 = vpack.c.b16 %v127, %v126
  %vm136 = vcmask 523264
  %v138 = vsel %vm136, %v103, 0
  %140 = vmatprep.subr.bf16.mxu0 0
  %141 = vmatpush1.bf16.msra.mxu0 0
  %142 = vmatprep.subr.bf16.mxu0 0
  %143 = vmatpush1.bf16.msra.mxu0 0
  %144 = vmatprep.subr.bf16.mxu0 0
  %145 = vmatpush1.bf16.msra.mxu0 0
  %146 = vmatprep.subr.bf16.mxu0 0
  %147 = vmatpush1.bf16.msra.mxu0 0
  %148 = vmatprep.subr.bf16.mxu0 0
  %149 = vmatpush1.bf16.msra.mxu0 %v131
  %150 = vmatprep.subr.bf16.mxu0 0
  %151 = vmatpush1.bf16.msra.mxu0 %v130
  %152 = vmatprep.subr.bf16.mxu0 0
  %153 = vmatpush1.bf16.msra.mxu0 %v129
  %154 = vmatprep.subr.bf16.mxu0 0
  %155 = vmatpush1.bf16.msra.mxu0 %v128
  %156 = vmatprep.subr.bf16.mxu0 0
  %157 = vmatpush2.bf16.msra.mxu0 0
  %158 = vmatprep.subr.bf16.mxu0 0
  %159 = vmatpush2.bf16.msra.mxu0 0
  %160 = vmatprep.subr.bf16.mxu0 0
  %161 = vmatpush2.bf16.msra.mxu0 0
  %162 = vmatprep.subr.bf16.mxu0 0
  %163 = vmatpush2.bf16.msra.mxu0 0
  %164 = vmatprep.subr.bf16.mxu0 0
  %165 = vmatpush2.bf16.msra.mxu0 0
  %166 = vmatprep.subr.bf16.mxu0 0
  %167 = vmatpush2.bf16.msra.mxu0 0
  %168 = vmatprep.subr.bf16.mxu0 0
  %169 = vmatpush2.bf16.msra.mxu0 0
  %170 = vmatprep.subr.bf16.mxu0 0
  %171 = vmatpush2.bf16.msra.mxu0 0
  %172 = vmatprep.mubr.bf16.mxu0 0
  %173 = vmatmul.mubr.bf16.gmra.mxu0 %v138
  %v174 = vpop.f32.mrf.mxu0
  %v175 = vadd.f32 0.0, %v174
  %v176 = vpop.f32.mrf.mxu0
  %v177 = vpop.f32.mrf.mxu0
  %v178 = vadd.f32 0.0, %v177
  %v179 = vpop.f32.mrf.mxu0
  %180 = vdwg.mxu0
  %v181 = vadd.f32 %v101, %v175
  %v182 = vadd.f32 %v102, %v178
  %183 = vst.msk [vmem:[#allocation2] sm:$0xff] %vm54, %v181
  %184 = vst.msk [vmem:[#allocation2 + $0x8] sm:$0xff] %vm54, %v182
  // Predicated region
  $region26: #{_encoder_layer_impl.11} parent=0 // pred_check
    %p185 = pneg %p21
  $region27: #{_encoder_layer_impl.11} parent=0 // pred_check_branch
    %187 = sbr.rel (%p185) target = $region29
  $region28: #{_encoder_layer_impl.11} parent=0 // pred_region
    %v188 = vld [vmem:[#allocation2] sm:$0xff]
    %v189 = vld [vmem:[#allocation2 + $0x8] sm:$0xff]
    %v190 = vld [vmem:[%s4] sm:$0x1]
    %v192 = vlaneseq
    %v193 = vshrl.u32 %v192, 7
    %v194 = vsub.s32 0, %v193
    %v195 = vrot.slane %v190, %v194
    %v197 = vadd.f32 %v188, %v195
    %v198 = vadd.f32 %v189, %v195
    %199 = vst.msk [vmem:[%s5] sm:$0xff] %vm54, %v197
    %200 = vst.msk [vmem:[%s5 + $0x8] sm:$0xff] %vm54, %v198
  $region29: #{_encoder_layer_impl.11} parent=0 // pred_fallthru
    _
  // Predicated region
  $region30: #{_encoder_layer_impl.11} parent=0 // pred_check
    _
  $region31: #{_encoder_layer_impl.11} parent=0 // pred_check_branch
    %202 = sbr.rel (0) target = $region33
  $region32: #{_encoder_layer_impl.11} parent=0 // pred_region
    _
  $region33: #{_encoder_layer_impl.11} parent=0 // pred_fallthru
    _
  // Predicated region
  $region34: #{_encoder_layer_impl.11} parent=0 // pred_check
    _
  $region35: #{_encoder_layer_impl.11} parent=0 // pred_check_branch
    %204 = sbr.rel (0) target = $region37
  $region36: #{_encoder_layer_impl.11} parent=0 // pred_region
    _
  $region37: #{_encoder_layer_impl.11} parent=0 // pred_fallthru
    _

</llo_original>
